<compile_context>
chip_gen: v5e
topology: v5e:2x2
jax: 0.10.0
libtpu: 0.0.40
codegen_flags: <defaults>
</compile_context>

<pallas_src>
import math

import jax
import jax.numpy as jnp
from jax.experimental import pallas as pl
from jax.experimental.pallas import tpu as pltpu

# Logical (PyTorch) hidden sizes.
H1, H2, H3 = 400, 400, 300
# Lane-padded hidden sizes (multiples of 128) and lane-dense output width.
H1P, H2P, H3P = 512, 512, 384
OUT_PAD = 128  # action_dim <= 128


def _round_up(x: int, m: int) -> int:
    return ((x + m - 1) // m) * m


def _cdiv(a: int, b: int) -> int:
    return (a + b - 1) // b


def _linear_init(key, fan_in, fan_out):
    """PyTorch-style nn.Linear init: U(-1/sqrt(fan_in), 1/sqrt(fan_in)).
    Stored as (in, out) so the kernel does act @ W + b."""
    kw, kb = jax.random.split(key)
    bound = 1.0 / math.sqrt(fan_in)
    w = jax.random.uniform(kw, (fan_in, fan_out), jnp.float32, -bound, bound)
    b = jax.random.uniform(kb, (1, fan_out), jnp.float32, -bound, bound)
    return w, b


def _pad_to(w, rows, cols):
    out = jnp.zeros((rows, cols), jnp.float32)
    return out.at[: w.shape[0], : w.shape[1]].set(w)


def prepare_actor_params(params_f32, action_dim):
    """Zero-pad hidden dims to 128-lane multiples and output to 128 lanes,
    then quantize weights to bf16 (biases stay f32).  Padding is exact:
    padded bias lanes are zero, so ReLU keeps padded activation lanes zero."""
    (w1, b1), (w2, b2), (w3, b3), (w4, b4) = params_f32
    state_dim = w1.shape[0]

    w1p = _pad_to(w1, state_dim, H1P)
    b1p = _pad_to(b1, 1, H1P)
    w2p = _pad_to(w2, H1P, H2P)
    b2p = _pad_to(b2, 1, H2P)
    w3p = _pad_to(w3, H2P, H3P)
    b3p = _pad_to(b3, 1, H3P)
    w4p = _pad_to(w4, H3P, OUT_PAD)
    b4p = _pad_to(b4, 1, OUT_PAD)

    bf16 = lambda w: w.astype(jnp.bfloat16)
    return ((bf16(w1p), b1p), (bf16(w2p), b2p), (bf16(w3p), b3p), (bf16(w4p), b4p))


def make_actor_kernel(max_action: float):
    def actor_kernel(x_ref,
                     w1_ref, b1_ref,
                     w2_ref, b2_ref,
                     w3_ref, b3_ref,
                     w4_ref, b4_ref,
                     out_ref):
        # Layer 1: Linear + ReLU. bf16 x bf16 on the MXU, f32 accumulate;
        # bias-add/ReLU in f32, then carry the intermediate as bf16.
        a = jnp.dot(x_ref[...].astype(jnp.bfloat16), w1_ref[...],
                    preferred_element_type=jnp.float32)
        a = jnp.maximum(a + b1_ref[...], 0.0).astype(jnp.bfloat16)
        # Layer 2: Linear + ReLU
        a = jnp.dot(a, w2_ref[...], preferred_element_type=jnp.float32)
        a = jnp.maximum(a + b2_ref[...], 0.0).astype(jnp.bfloat16)
        # Layer 3: Linear + ReLU
        a = jnp.dot(a, w3_ref[...], preferred_element_type=jnp.float32)
        a = jnp.maximum(a + b3_ref[...], 0.0).astype(jnp.bfloat16)
        # Layer 4: Linear (output lane-padded to 128) + tanh, scale by max_action.
        a = jnp.dot(a, w4_ref[...], preferred_element_type=jnp.float32)
        a = jnp.tanh(a + b4_ref[...])
        out_ref[...] = (max_action * a).astype(out_ref.dtype)

    return actor_kernel


def actor_forward(state, q_params, max_action: float, action_dim: int,
                  *, batch_tile: int = 1024):
    """state: (batch, state_dim) f32 -> (batch, action_dim) f32."""
    (w1, b1), (w2, b2), (w3, b3), (w4, b4) = q_params
    batch, state_dim = state.shape

    # Balanced batch tiling:
    #  * at least 2 grid steps when batch >= 16 so v7x's two TensorCores both
    #    get work (the "parallel" axis shards across cores),
    #  * tiles of roughly equal size (round_up(cdiv(batch, steps), 8)) so row
    #    padding waste is split evenly instead of landing on the last tile.
    num_steps = _cdiv(batch, batch_tile)
    if batch >= 16:
        num_steps = max(num_steps, 2)
    tb = _round_up(_cdiv(batch, num_steps), 8)
    padded_batch = tb * num_steps
    if padded_batch != batch:
        state = jnp.pad(state, ((0, padded_batch - batch), (0, 0)))
    grid = (num_steps,)

    const = lambda i: (0, 0)  # weights/biases: same block every step -> resident in VMEM

    out = pl.pallas_call(
        make_actor_kernel(max_action),
        out_shape=jax.ShapeDtypeStruct((padded_batch, OUT_PAD), jnp.float32),
        grid_spec=pltpu.PrefetchScalarGridSpec(
            num_scalar_prefetch=0,
            grid=grid,
            in_specs=[
                pl.BlockSpec((tb, state_dim), lambda i: (i, 0)),
                pl.BlockSpec(w1.shape, const), pl.BlockSpec(b1.shape, const),
                pl.BlockSpec(w2.shape, const), pl.BlockSpec(b2.shape, const),
                pl.BlockSpec(w3.shape, const), pl.BlockSpec(b3.shape, const),
                pl.BlockSpec(w4.shape, const), pl.BlockSpec(b4.shape, const),
            ],
            out_specs=pl.BlockSpec((tb, OUT_PAD), lambda i: (i, 0)),
        ),
        compiler_params=pltpu.CompilerParams(
            dimension_semantics=("parallel",),
            vmem_limit_bytes=32 * 1024 * 1024,
        ),
    )(state, w1, b1, w2, b2, w3, b3, w4, b4)

    return out[:batch, :action_dim]


def actor_forward_ref_f32(state, params_f32, max_action: float):
    """Pure-JAX full-f32 reference (original module semantics)."""
    (w1, b1), (w2, b2), (w3, b3), (w4, b4) = params_f32
    a = jnp.maximum(state @ w1 + b1, 0.0)
    a = jnp.maximum(a @ w2 + b2, 0.0)
    a = jnp.maximum(a @ w3 + b3, 0.0)
    return max_action * jnp.tanh(a @ w4 + b4)


def actor_forward_ref_bf16(state, q_params, max_action: float, action_dim: int):
    """Pure-JAX reference mirroring the kernel's bf16 weight *and* activation
    rounding (padded lanes are exact zeros, so the result is unaffected)."""
    (w1, b1), (w2, b2), (w3, b3), (w4, b4) = q_params

    def layer(a, w, b):
        return jnp.dot(a.astype(jnp.bfloat16), w,
                       preferred_element_type=jnp.float32) + b

    a = jnp.maximum(layer(state, w1, b1), 0.0).astype(jnp.bfloat16)
    a = jnp.maximum(layer(a, w2, b2), 0.0).astype(jnp.bfloat16)
    a = jnp.maximum(layer(a, w3, b3), 0.0).astype(jnp.bfloat16)
    a = max_action * jnp.tanh(layer(a, w4, b4))
    return a[:, :action_dim]


if __name__ == "__main__":
    # BipedalWalkerHardcore: state_dim=24, action_dim=4, max_action=1.0
    state_dim, action_dim, max_action = 24, 4, 1.0

    key = jax.random.PRNGKey(0)
    k_in, k_in2, k1, k2, k3, k4 = jax.random.split(key, 6)

    params_f32 = (
        _linear_init(k1, state_dim, H1),
        _linear_init(k2, H1, H2),
        _linear_init(k3, H2, H3),
        _linear_init(k4, H3, action_dim),
    )
    q_params = prepare_actor_params(params_f32, action_dim)

    # Case 1: tiny inference batch (TD3 action selection), batch=2.
    state_small = jax.random.normal(k_in, (2, state_dim), jnp.float32)
    out_small = jax.block_until_ready(
        actor_forward(state_small, q_params, max_action, action_dim))
    assert out_small.shape == (2, action_dim)

    ref_q = actor_forward_ref_bf16(state_small, q_params, max_action, action_dim)
    ref_f = actor_forward_ref_f32(state_small, params_f32, max_action)
    assert jnp.allclose(out_small, ref_q, atol=2e-3, rtol=2e-3), (out_small, ref_q)
    # Looser check vs. full-f32 reference: bf16 weight+activation rounding error.
    assert jnp.allclose(out_small, ref_f, atol=5e-2, rtol=5e-2), (out_small, ref_f)

    # Case 2: training-sized batch (exercises the balanced >=2-step grid +
    # row-padding path: 300 -> two 152-row tiles).
    state_big = jax.random.normal(k_in2, (300, state_dim), jnp.float32)
    out_big = jax.block_until_ready(
        actor_forward(state_big, q_params, max_action, action_dim))
    assert out_big.shape == (300, action_dim)
    ref_qb = actor_forward_ref_bf16(state_big, q_params, max_action, action_dim)
    assert jnp.allclose(out_big, ref_qb, atol=2e-3, rtol=2e-3)
    ref_fb = actor_forward_ref_f32(state_big, params_f32, max_action)
    assert jnp.allclose(out_big, ref_fb, atol=5e-2, rtol=5e-2)

    print("KERNEL_OK")
</pallas_src>

<mosaic_0001>
module attributes {stable_mosaic.version = 11 : i64} {
  func.func @actor_kernel(%arg0: i32, %arg1: memref<8x24xf32, #tpu.memory_space<vmem>>, %arg2: memref<24x512xbf16, #tpu.memory_space<vmem>>, %arg3: memref<1x512xf32, #tpu.memory_space<vmem>>, %arg4: memref<512x512xbf16, #tpu.memory_space<vmem>>, %arg5: memref<1x512xf32, #tpu.memory_space<vmem>>, %arg6: memref<512x384xbf16, #tpu.memory_space<vmem>>, %arg7: memref<1x384xf32, #tpu.memory_space<vmem>>, %arg8: memref<384x128xbf16, #tpu.memory_space<vmem>>, %arg9: memref<1x128xf32, #tpu.memory_space<vmem>>, %arg10: memref<8x128xf32, #tpu.memory_space<vmem>>) attributes {dimension_semantics = [#tpu.dimension_semantics<parallel>], iteration_bounds = array<i64: 1>, scalar_prefetch = 0 : i64, scratch_operands = 0 : i64, tpu.core_type = #tpu.core_type<tc>, window_params = [{transform_indices = @transform_0, window_bounds = array<i64: 8, 24>}, {pipeline_mode = #tpu.pipeline_mode<synchronous>, transform_indices = @transform_1, window_bounds = array<i64: 24, 512>}, {pipeline_mode = #tpu.pipeline_mode<synchronous>, transform_indices = @transform_2, window_bounds = array<i64: 1, 512>}, {pipeline_mode = #tpu.pipeline_mode<synchronous>, transform_indices = @transform_3, window_bounds = array<i64: 512, 512>}, {pipeline_mode = #tpu.pipeline_mode<synchronous>, transform_indices = @transform_4, window_bounds = array<i64: 1, 512>}, {pipeline_mode = #tpu.pipeline_mode<synchronous>, transform_indices = @transform_5, window_bounds = array<i64: 512, 384>}, {pipeline_mode = #tpu.pipeline_mode<synchronous>, transform_indices = @transform_6, window_bounds = array<i64: 1, 384>}, {pipeline_mode = #tpu.pipeline_mode<synchronous>, transform_indices = @transform_7, window_bounds = array<i64: 384, 128>}, {pipeline_mode = #tpu.pipeline_mode<synchronous>, transform_indices = @transform_8, window_bounds = array<i64: 1, 128>}, {transform_indices = @transform_9, window_bounds = array<i64: 8, 128>}]} {
    %c0 = arith.constant 0 : index
    %c0_0 = arith.constant 0 : index
    %0 = vector.load %arg1[%c0, %c0_0] : memref<8x24xf32, #tpu.memory_space<vmem>>, vector<8x24xf32>
    %1 = arith.truncf %0 : vector<8x24xf32> to vector<8x24xbf16>
    %c0_1 = arith.constant 0 : index
    %c0_2 = arith.constant 0 : index
    %2 = vector.load %arg2[%c0_1, %c0_2] : memref<24x512xbf16, #tpu.memory_space<vmem>>, vector<24x512xbf16>
    %cst = arith.constant dense<0.000000e+00> : vector<8x512xf32>
    %3 = tpu.matmul %1, %2, %cst {dimension_numbers = #tpu.dot_dimension_numbers<[1], [0], [0], [1], [0, 0, 1, 1], [], []>} : vector<8x24xbf16>, vector<24x512xbf16>, vector<8x512xf32> -> vector<8x512xf32>
    %c0_3 = arith.constant 0 : index
    %c0_4 = arith.constant 0 : index
    %4 = vector.load %arg3[%c0_3, %c0_4] : memref<1x512xf32, #tpu.memory_space<vmem>>, vector<1x512xf32>
    %5 = vector.broadcast %4 : vector<1x512xf32> to vector<8x512xf32>
    %6 = arith.addf %3, %5 : vector<8x512xf32>
    %cst_5 = arith.constant 0.000000e+00 : f32
    %7 = vector.broadcast %cst_5 : f32 to vector<8x512xf32>
    %8 = arith.maximumf %6, %7 : vector<8x512xf32>
    %9 = arith.truncf %8 : vector<8x512xf32> to vector<8x512xbf16>
    %c0_6 = arith.constant 0 : index
    %c0_7 = arith.constant 0 : index
    %10 = vector.load %arg4[%c0_6, %c0_7] : memref<512x512xbf16, #tpu.memory_space<vmem>>, vector<512x512xbf16>
    %cst_8 = arith.constant dense<0.000000e+00> : vector<8x512xf32>
    %11 = tpu.matmul %9, %10, %cst_8 {dimension_numbers = #tpu.dot_dimension_numbers<[1], [0], [0], [1], [0, 0, 1, 1], [], []>} : vector<8x512xbf16>, vector<512x512xbf16>, vector<8x512xf32> -> vector<8x512xf32>
    %c0_9 = arith.constant 0 : index
    %c0_10 = arith.constant 0 : index
    %12 = vector.load %arg5[%c0_9, %c0_10] : memref<1x512xf32, #tpu.memory_space<vmem>>, vector<1x512xf32>
    %13 = vector.broadcast %12 : vector<1x512xf32> to vector<8x512xf32>
    %14 = arith.addf %11, %13 : vector<8x512xf32>
    %cst_11 = arith.constant 0.000000e+00 : f32
    %15 = vector.broadcast %cst_11 : f32 to vector<8x512xf32>
    %16 = arith.maximumf %14, %15 : vector<8x512xf32>
    %17 = arith.truncf %16 : vector<8x512xf32> to vector<8x512xbf16>
    %c0_12 = arith.constant 0 : index
    %c0_13 = arith.constant 0 : index
    %18 = vector.load %arg6[%c0_12, %c0_13] : memref<512x384xbf16, #tpu.memory_space<vmem>>, vector<512x384xbf16>
    %cst_14 = arith.constant dense<0.000000e+00> : vector<8x384xf32>
    %19 = tpu.matmul %17, %18, %cst_14 {dimension_numbers = #tpu.dot_dimension_numbers<[1], [0], [0], [1], [0, 0, 1, 1], [], []>} : vector<8x512xbf16>, vector<512x384xbf16>, vector<8x384xf32> -> vector<8x384xf32>
    %c0_15 = arith.constant 0 : index
    %c0_16 = arith.constant 0 : index
    %20 = vector.load %arg7[%c0_15, %c0_16] : memref<1x384xf32, #tpu.memory_space<vmem>>, vector<1x384xf32>
    %21 = vector.broadcast %20 : vector<1x384xf32> to vector<8x384xf32>
    %22 = arith.addf %19, %21 : vector<8x384xf32>
    %cst_17 = arith.constant 0.000000e+00 : f32
    %23 = vector.broadcast %cst_17 : f32 to vector<8x384xf32>
    %24 = arith.maximumf %22, %23 : vector<8x384xf32>
    %25 = arith.truncf %24 : vector<8x384xf32> to vector<8x384xbf16>
    %c0_18 = arith.constant 0 : index
    %c0_19 = arith.constant 0 : index
    %26 = vector.load %arg8[%c0_18, %c0_19] : memref<384x128xbf16, #tpu.memory_space<vmem>>, vector<384x128xbf16>
    %cst_20 = arith.constant dense<0.000000e+00> : vector<8x128xf32>
    %27 = tpu.matmul %25, %26, %cst_20 {dimension_numbers = #tpu.dot_dimension_numbers<[1], [0], [0], [1], [0, 0, 1, 1], [], []>} : vector<8x384xbf16>, vector<384x128xbf16>, vector<8x128xf32> -> vector<8x128xf32>
    %c0_21 = arith.constant 0 : index
    %c0_22 = arith.constant 0 : index
    %28 = vector.load %arg9[%c0_21, %c0_22] : memref<1x128xf32, #tpu.memory_space<vmem>>, vector<1x128xf32>
    %29 = vector.broadcast %28 : vector<1x128xf32> to vector<8x128xf32>
    %30 = arith.addf %27, %29 : vector<8x128xf32>
    %31 = math.tanh %30 : vector<8x128xf32>
    %cst_23 = arith.constant 1.000000e+00 : f32
    %32 = vector.broadcast %cst_23 : f32 to vector<8x128xf32>
    %33 = arith.mulf %32, %31 : vector<8x128xf32>
    %c0_24 = arith.constant 0 : index
    %c0_25 = arith.constant 0 : index
    %34 = vector.load %arg10[%c0_24, %c0_25] : memref<8x128xf32, #tpu.memory_space<vmem>>, vector<8x128xf32>
    tpu.vector_store %arg10[%c0_24, %c0_25], %33 {strides = array<i32>} : memref<8x128xf32, #tpu.memory_space<vmem>>, vector<8x128xf32>,
    return
  }
  func.func @transform_0(%arg0: i32) -> (i32, i32) {
    %c0_i32 = arith.constant 0 : i32
    %c0_i32_0 = arith.constant 0 : i32
    return %arg0, %c0_i32 : i32, i32
  }
  func.func @transform_1(%arg0: i32) -> (i32, i32) {
    %c0_i32 = arith.constant 0 : i32
    %c0_i32_0 = arith.constant 0 : i32
    %c0_i32_1 = arith.constant 0 : i32
    return %c0_i32, %c0_i32_0 : i32, i32
  }
  func.func @transform_2(%arg0: i32) -> (i32, i32) {
    %c0_i32 = arith.constant 0 : i32
    %c0_i32_0 = arith.constant 0 : i32
    %c0_i32_1 = arith.constant 0 : i32
    return %c0_i32, %c0_i32_0 : i32, i32
  }
  func.func @transform_3(%arg0: i32) -> (i32, i32) {
    %c0_i32 = arith.constant 0 : i32
    %c0_i32_0 = arith.constant 0 : i32
    %c0_i32_1 = arith.constant 0 : i32
    return %c0_i32, %c0_i32_0 : i32, i32
  }
  func.func @transform_4(%arg0: i32) -> (i32, i32) {
    %c0_i32 = arith.constant 0 : i32
    %c0_i32_0 = arith.constant 0 : i32
    %c0_i32_1 = arith.constant 0 : i32
    return %c0_i32, %c0_i32_0 : i32, i32
  }
  func.func @transform_5(%arg0: i32) -> (i32, i32) {
    %c0_i32 = arith.constant 0 : i32
    %c0_i32_0 = arith.constant 0 : i32
    %c0_i32_1 = arith.constant 0 : i32
    return %c0_i32, %c0_i32_0 : i32, i32
  }
  func.func @transform_6(%arg0: i32) -> (i32, i32) {
    %c0_i32 = arith.constant 0 : i32
    %c0_i32_0 = arith.constant 0 : i32
    %c0_i32_1 = arith.constant 0 : i32
    return %c0_i32, %c0_i32_0 : i32, i32
  }
  func.func @transform_7(%arg0: i32) -> (i32, i32) {
    %c0_i32 = arith.constant 0 : i32
    %c0_i32_0 = arith.constant 0 : i32
    %c0_i32_1 = arith.constant 0 : i32
    return %c0_i32, %c0_i32_0 : i32, i32
  }
  func.func @transform_8(%arg0: i32) -> (i32, i32) {
    %c0_i32 = arith.constant 0 : i32
    %c0_i32_0 = arith.constant 0 : i32
    %c0_i32_1 = arith.constant 0 : i32
    return %c0_i32, %c0_i32_0 : i32, i32
  }
  func.func @transform_9(%arg0: i32) -> (i32, i32) {
    %c0_i32 = arith.constant 0 : i32
    %c0_i32_0 = arith.constant 0 : i32
    return %arg0, %c0_i32 : i32, i32
  }
}

</mosaic_0001>

<llo_original>
// kernel: tpu_custom_call.1
$region0: #{tpu_custom_call.1}
  #allocation0 [shape = 'u32[]', space=smem, size = 0x4, offset = 0x4, fixed_abs, tag = 'smem constant byte address 0x4 - core index']
  #allocation1 [shape = 'u32[72,128]{1,0:T(1,128)}', space=vmem, size = 0x9000, scoped, tag = 'internal scratch']
  %s0 = inlined_call_operand.hbm [shape: f32[8,24], index: 0, kind: input, shape index: {}]
  %s1 = inlined_call_operand.hbm [shape: bf16[24,512], index: 1, kind: input, shape index: {}]
  %s2 = inlined_call_operand.hbm [shape: f32[1,512], index: 2, kind: input, shape index: {}]
  %s3 = inlined_call_operand.hbm [shape: bf16[512,512], index: 3, kind: input, shape index: {}]
  %s4 = inlined_call_operand.hbm [shape: f32[1,512], index: 4, kind: input, shape index: {}]
  %s5 = inlined_call_operand.hbm [shape: bf16[512,384], index: 5, kind: input, shape index: {}]
  %s6 = inlined_call_operand.vmem [shape: f32[1,384], index: 6, kind: input, shape index: {}]
  %s7 = inlined_call_operand.hbm [shape: bf16[384,128], index: 7, kind: input, shape index: {}]
  %s8 = inlined_call_operand.vmem [shape: f32[1,128], index: 8, kind: input, shape index: {}]
  %s9 = inlined_call_operand.hbm [shape: f32[8,128], index: 9, kind: output, shape index: {}]
  %s10 = sld [smem:[#allocation0]]
  $region74: #{tpu_custom_call.1} parent=0
    _
  %s12 = ssub.s32 1, %s10
  %s13 = scalar_select 0, %s12, %s10
  $region1: #{tpu_custom_call.1} parent=0
    #allocation2 [shape = 'u8[4096]{0}', space=vmem, size = 0x1000, scoped, tag = 'input window, operand 0, single buffered']
    #allocation3 [shape = 's32[1]{0}', space=sflag, size = 0x4, scoped, tag = 'scoped memory for tpu_custom_call.1']
    #allocation4 [shape = 's32[1]{0}', space=sflag, size = 0x4, scoped, tag = 'scoped memory for tpu_custom_call.1']
    #allocation5 [shape = 'u8[24576]{0}', space=vmem, size = 0x6000, scoped, tag = 'input window, operand 1, single buffered']
    #allocation6 [shape = 's32[1]{0}', space=sflag, size = 0x4, scoped, tag = 'scoped memory for tpu_custom_call.1']
    #allocation7 [shape = 'u8[2048]{0}', space=vmem, size = 0x800, scoped, tag = 'input window, operand 2, single buffered']
    #allocation8 [shape = 'u8[524288]{0}', space=vmem, size = 0x80000, scoped, tag = 'input window, operand 3, single buffered']
    #allocation9 [shape = 's32[1]{0}', space=sflag, size = 0x4, scoped, tag = 'scoped memory for tpu_custom_call.1']
    #allocation10 [shape = 'u8[2048]{0}', space=vmem, size = 0x800, scoped, tag = 'input window, operand 4, single buffered']
    #allocation11 [shape = 'u8[393216]{0}', space=vmem, size = 0x60000, scoped, tag = 'input window, operand 5, single buffered']
    #allocation12 [shape = 's32[1]{0}', space=sflag, size = 0x4, scoped, tag = 'scoped memory for tpu_custom_call.1']
    #allocation13 [shape = 'u8[98304]{0}', space=vmem, size = 0x18000, scoped, tag = 'input window, operand 7, single buffered']
    #allocation14 [shape = 'u8[4096]{0}', space=vmem, size = 0x1000, scoped, tag = 'output window, operand 0, single buffered']
    %14 = vsyncpa [#allocation3], 0
    %15 = vsyncpa [#allocation6], 0
    %16 = vsyncpa [#allocation9], 0
    %17 = vsyncpa [#allocation12], 0
    %18 = vsyncpa [#allocation4], 0
    // Predicated region
    $region2: #{tpu_custom_call.1} parent=1 // pred_check
      _
    $region3: #{tpu_custom_call.1} parent=1 // pred_check_branch
      %20 = sbr.rel (0) target = $region5
    $region4: #{tpu_custom_call.1} parent=1 // pred_region
      %22 = vsyncadd [#allocation3], 0
      %s24 = sshll.u32 %s0, 4
      %s25 = int_to_ptr.hbm [resolvable:$true] %s24
      %s26 = sshll.u32 [#allocation2], 4
      %s27 = int_to_ptr.vmem [resolvable:$true] %s26
      %29 = dma.hbm_to_vmem [thread:$0]  %s25, 128, %s27, [#allocation3]
    $region5: #{tpu_custom_call.1} parent=1 // pred_fallthru
      _
    // Predicated region
    $region6: #{tpu_custom_call.1} parent=1 // pred_check
      _
    $region7: #{tpu_custom_call.1} parent=1 // pred_check_branch
      %31 = sbr.rel (0) target = $region9
    $region8: #{tpu_custom_call.1} parent=1 // pred_region
      %33 = vsyncadd [#allocation6], 0
      %s34 = sshll.u32 %s1, 4
      %s35 = int_to_ptr.hbm [resolvable:$true] %s34
      %s36 = sshll.u32 [#allocation5], 4
      %s37 = int_to_ptr.vmem [resolvable:$true] %s36
      %42 = dma.hbm_to_vmem [thread:$0]  %s35, 768, %s37, [#allocation6], 256, 256, 16
    $region9: #{tpu_custom_call.1} parent=1 // pred_fallthru
      _
    // Predicated region
    $region10: #{tpu_custom_call.1} parent=1 // pred_check
      _
    $region11: #{tpu_custom_call.1} parent=1 // pred_check_branch
      %44 = sbr.rel (0) target = $region13
    $region12: #{tpu_custom_call.1} parent=1 // pred_region
      %46 = vsyncadd [#allocation6], 0
      %s48 = sshll.u32 %s2, 4
      %s49 = int_to_ptr.hbm [resolvable:$true] %s48
      %s50 = sshll.u32 [#allocation7], 4
      %s51 = int_to_ptr.vmem [resolvable:$true] %s50
      %53 = dma.hbm_to_vmem [thread:$0]  %s49, 64, %s51, [#allocation6]
    $region13: #{tpu_custom_call.1} parent=1 // pred_fallthru
      _
    // Predicated region
    $region14: #{tpu_custom_call.1} parent=1 // pred_check
      _
    $region15: #{tpu_custom_call.1} parent=1 // pred_check_branch
      %55 = sbr.rel (0) target = $region17
    $region16: #{tpu_custom_call.1} parent=1 // pred_region
      %57 = vsyncadd [#allocation9], 0
      %s58 = sshll.u32 %s3, 4
      %s59 = int_to_ptr.hbm [resolvable:$true] %s58
      %s60 = sshll.u32 [#allocation8], 4
      %s61 = int_to_ptr.vmem [resolvable:$true] %s60
      %66 = dma.hbm_to_vmem [thread:$0]  %s59, 16384, %s61, [#allocation9], 256, 256, 16
    $region17: #{tpu_custom_call.1} parent=1 // pred_fallthru
      _
    // Predicated region
    $region18: #{tpu_custom_call.1} parent=1 // pred_check
      _
    $region19: #{tpu_custom_call.1} parent=1 // pred_check_branch
      %68 = sbr.rel (0) target = $region21
    $region20: #{tpu_custom_call.1} parent=1 // pred_region
      %70 = vsyncadd [#allocation9], 0
      %s72 = sshll.u32 %s4, 4
      %s73 = int_to_ptr.hbm [resolvable:$true] %s72
      %s74 = sshll.u32 [#allocation10], 4
      %s75 = int_to_ptr.vmem [resolvable:$true] %s74
      %77 = dma.hbm_to_vmem [thread:$0]  %s73, 64, %s75, [#allocation9]
    $region21: #{tpu_custom_call.1} parent=1 // pred_fallthru
      _
    // Predicated region
    $region22: #{tpu_custom_call.1} parent=1 // pred_check
      _
    $region23: #{tpu_custom_call.1} parent=1 // pred_check_branch
      %79 = sbr.rel (0) target = $region25
    $region24: #{tpu_custom_call.1} parent=1 // pred_region
      %81 = vsyncadd [#allocation12], 0
      %s82 = sshll.u32 %s5, 4
      %s83 = int_to_ptr.hbm [resolvable:$true] %s82
      %s84 = sshll.u32 [#allocation11], 4
      %s85 = int_to_ptr.vmem [resolvable:$true] %s84
      %90 = dma.hbm_to_vmem [thread:$0]  %s83, 12288, %s85, [#allocation12], 192, 192, 12
    $region25: #{tpu_custom_call.1} parent=1 // pred_fallthru
      _
    // Predicated region
    $region26: #{tpu_custom_call.1} parent=1 // pred_check
      _
    $region27: #{tpu_custom_call.1} parent=1 // pred_check_branch
      %92 = sbr.rel (0) target = $region29
    $region28: #{tpu_custom_call.1} parent=1 // pred_region
      _
    $region29: #{tpu_custom_call.1} parent=1 // pred_fallthru
      _
    // Predicated region
    $region30: #{tpu_custom_call.1} parent=1 // pred_check
      _
    $region31: #{tpu_custom_call.1} parent=1 // pred_check_branch
      %94 = sbr.rel (0) target = $region33
    $region32: #{tpu_custom_call.1} parent=1 // pred_region
      %96 = vsyncadd [#allocation12], 0
      %s97 = sshll.u32 %s7, 4
      %s98 = int_to_ptr.hbm [resolvable:$true] %s97
      %s99 = sshll.u32 [#allocation13], 4
      %s100 = int_to_ptr.vmem [resolvable:$true] %s99
      %105 = dma.hbm_to_vmem [thread:$0]  %s98, 3072, %s100, [#allocation12], 64, 64, 4
    $region33: #{tpu_custom_call.1} parent=1 // pred_fallthru
      _
    // Predicated region
    $region34: #{tpu_custom_call.1} parent=1 // pred_check
      _
    $region35: #{tpu_custom_call.1} parent=1 // pred_check_branch
      %107 = sbr.rel (0) target = $region37
    $region36: #{tpu_custom_call.1} parent=1 // pred_region
      _
    $region37: #{tpu_custom_call.1} parent=1 // pred_fallthru
      _
    // Predicated region
    $region38: #{tpu_custom_call.1} parent=1 // pred_check
      _
    $region39: #{tpu_custom_call.1} parent=1 // pred_check_branch
      %109 = sbr.rel (0) target = $region41
    $region40: #{tpu_custom_call.1} parent=1 // pred_region
      %111 = dma.done [#allocation3], 128
    $region41: #{tpu_custom_call.1} parent=1 // pred_fallthru
      _
    // Predicated region
    $region42: #{tpu_custom_call.1} parent=1 // pred_check
      _
    $region43: #{tpu_custom_call.1} parent=1 // pred_check_branch
      %113 = sbr.rel (0) target = $region45
    $region44: #{tpu_custom_call.1} parent=1 // pred_region
      %115 = dma.done [#allocation6], 768
    $region45: #{tpu_custom_call.1} parent=1 // pred_fallthru
      _
    // Predicated region
    $region46: #{tpu_custom_call.1} parent=1 // pred_check
      _
    $region47: #{tpu_custom_call.1} parent=1 // pred_check_branch
      %117 = sbr.rel (0) target = $region49
    $region48: #{tpu_custom_call.1} parent=1 // pred_region
      %119 = dma.done [#allocation6], 64
    $region49: #{tpu_custom_call.1} parent=1 // pred_fallthru
      _
    // Predicated region
    $region50: #{tpu_custom_call.1} parent=1 // pred_check
      _
    $region51: #{tpu_custom_call.1} parent=1 // pred_check_branch
      %121 = sbr.rel (0) target = $region53
    $region52: #{tpu_custom_call.1} parent=1 // pred_region
      %123 = dma.done [#allocation9], 16384
    $region53: #{tpu_custom_call.1} parent=1 // pred_fallthru
      _
    // Predicated region
    $region54: #{tpu_custom_call.1} parent=1 // pred_check
      _
    $region55: #{tpu_custom_call.1} parent=1 // pred_check_branch
      %125 = sbr.rel (0) target = $region57
    $region56: #{tpu_custom_call.1} parent=1 // pred_region
      %127 = dma.done [#allocation9], 64
    $region57: #{tpu_custom_call.1} parent=1 // pred_fallthru
      _
    // Predicated region
    $region58: #{tpu_custom_call.1} parent=1 // pred_check
      _
    $region59: #{tpu_custom_call.1} parent=1 // pred_check_branch
      %129 = sbr.rel (0) target = $region61
    $region60: #{tpu_custom_call.1} parent=1 // pred_region
      %131 = dma.done [#allocation12], 12288
    $region61: #{tpu_custom_call.1} parent=1 // pred_fallthru
      _
    // Predicated region
    $region62: #{tpu_custom_call.1} parent=1 // pred_check
      _
    $region63: #{tpu_custom_call.1} parent=1 // pred_check_branch
      %133 = sbr.rel (0) target = $region65
    $region64: #{tpu_custom_call.1} parent=1 // pred_region
      %135 = dma.done [#allocation12], 3072
    $region65: #{tpu_custom_call.1} parent=1 // pred_fallthru
      _
    %v137 = vld [vmem:[#allocation2] sm:$0xff]
    %v138 = vpack.c.bf16 %v137, %v137
    %v139 = vld [vmem:[#allocation5] sm:$0xff]
    %v140 = vld [vmem:[#allocation5 + $0x8] sm:$0xff]
    %v141 = vld [vmem:[#allocation5 + $0x10] sm:$0xff]
    %v142 = vld [vmem:[#allocation5 + $0x18] sm:$0xff]
    %v143 = vld [vmem:[#allocation5 + $0x20] sm:$0xff]
    %v144 = vld [vmem:[#allocation5 + $0x28] sm:$0xff]
    %v145 = vld [vmem:[#allocation7] sm:$0xf]
    %v147 = vperm.slane %v145, 0
    %v148 = vperm.slane %v145, 1
    %v149 = vperm.slane %v145, 2
    %v150 = vperm.slane %v145, 3
    %v161 = vunpack.c.l.b16 %v139
    %v162 = vunpack.c.h.b16 %v139
    %v163 = vunpack.c.l.b16 %v140
    %v164 = vunpack.c.h.b16 %v140
    %v165 = vunpack.c.l.b16 %v141
    %v166 = vunpack.c.h.b16 %v141
    %v167 = vunpack.c.l.b16 %v142
    %v168 = vunpack.c.h.b16 %v142
    %v169 = vunpack.c.l.b16 %v143
    %v170 = vunpack.c.h.b16 %v143
    %v171 = vunpack.c.l.b16 %v144
    %v172 = vunpack.c.h.b16 %v144
    %v173 = vpack.c.b16 %v165, %v161
    %v174 = vpack.c.b16 %v166, %v162
    %v175 = vpack.c.b16 %v167, %v163
    %v176 = vpack.c.b16 %v168, %v164
    %v177 = vpack.c.b16 %v169, %v169
    %v178 = vpack.c.b16 %v170, %v170
    %v179 = vpack.c.b16 %v171, %v171
    %v180 = vpack.c.b16 %v172, %v172
    %vm185 = vcmask 195584
    %v187 = vsel %vm185, %v138, 0
    %vm189 = vcmask 1043456
    %v191 = vsel %vm189, %v177, 0
    %v194 = vsel %vm189, %v178, 0
    %v197 = vsel %vm189, %v179, 0
    %v200 = vsel %vm189, %v180, 0
    %202 = vmatpush.bf16.msra.mxu0 0
    %203 = vmatpush.bf16.msra.mxu0 0
    %204 = vmatpush.bf16.msra.mxu0 0
    %205 = vmatpush.bf16.msra.mxu0 0
    %206 = vmatpush.bf16.msra.mxu0 0
    %207 = vmatpush.bf16.msra.mxu0 0
    %208 = vmatpush.bf16.msra.mxu0 %v191
    %209 = vmatpush.bf16.msra.mxu0 %v173
    %210 = vmatmul.bf16.gmra.mxu0 %v187
    %v211 = vpop.f32.mrf.mxu0
    %v212 = vadd.f32 %v147, %v211
    %v213 = vpop.f32.mrf.mxu0
    %214 = vdwg.mxu0
    %215 = vmatpush.bf16.msra.mxu0 0
    %216 = vmatpush.bf16.msra.mxu0 0
    %217 = vmatpush.bf16.msra.mxu0 0
    %218 = vmatpush.bf16.msra.mxu0 0
    %219 = vmatpush.bf16.msra.mxu0 0
    %220 = vmatpush.bf16.msra.mxu0 0
    %221 = vmatpush.bf16.msra.mxu0 %v194
    %222 = vmatpush.bf16.msra.mxu0 %v174
    %223 = vmatmul.bf16.gmra.mxu0 %v187
    %v224 = vpop.f32.mrf.mxu0
    %v225 = vadd.f32 %v148, %v224
    %v226 = vpop.f32.mrf.mxu0
    %227 = vdwg.mxu0
    %228 = vmatpush.bf16.msra.mxu0 0
    %229 = vmatpush.bf16.msra.mxu0 0
    %230 = vmatpush.bf16.msra.mxu0 0
    %231 = vmatpush.bf16.msra.mxu0 0
    %232 = vmatpush.bf16.msra.mxu0 0
    %233 = vmatpush.bf16.msra.mxu0 0
    %234 = vmatpush.bf16.msra.mxu0 %v197
    %235 = vmatpush.bf16.msra.mxu0 %v175
    %236 = vmatmul.bf16.gmra.mxu0 %v187
    %v237 = vpop.f32.mrf.mxu0
    %v238 = vadd.f32 %v149, %v237
    %v239 = vpop.f32.mrf.mxu0
    %240 = vdwg.mxu0
    %241 = vmatpush.bf16.msra.mxu0 0
    %242 = vmatpush.bf16.msra.mxu0 0
    %243 = vmatpush.bf16.msra.mxu0 0
    %244 = vmatpush.bf16.msra.mxu0 0
    %245 = vmatpush.bf16.msra.mxu0 0
    %246 = vmatpush.bf16.msra.mxu0 0
    %247 = vmatpush.bf16.msra.mxu0 %v200
    %248 = vmatpush.bf16.msra.mxu0 %v176
    %249 = vmatmul.bf16.gmra.mxu0 %v187
    %v250 = vpop.f32.mrf.mxu0
    %v251 = vadd.f32 %v150, %v250
    %v252 = vpop.f32.mrf.mxu0
    %253 = vdwg.mxu0
    %v254 = vmax.f32 %v212, 0.0
    %v255 = vmax.f32 %v225, 0.0
    %v256 = vmax.f32 %v238, 0.0
    %v257 = vmax.f32 %v251, 0.0
    %v258 = vpack.c.bf16 %v254, %v254
    %v259 = vpack.c.bf16 %v255, %v255
    %v260 = vpack.c.bf16 %v256, %v256
    %v261 = vpack.c.bf16 %v257, %v257
    %v262 = vld [vmem:[#allocation8] sm:$0xff]
    %v263 = vld [vmem:[#allocation8 + $0x8] sm:$0xff]
    %v264 = vld [vmem:[#allocation8 + $0x10] sm:$0xff]
    %v265 = vld [vmem:[#allocation8 + $0x18] sm:$0xff]
    %v266 = vld [vmem:[#allocation8 + $0x20] sm:$0xff]
    %v267 = vld [vmem:[#allocation8 + $0x28] sm:$0xff]
    %v268 = vld [vmem:[#allocation8 + $0x30] sm:$0xff]
    %v269 = vld [vmem:[#allocation8 + $0x38] sm:$0xff]
    %v270 = vld [vmem:[#allocation8 + $0x40] sm:$0xff]
    %v271 = vld [vmem:[#allocation8 + $0x48] sm:$0xff]
    %v272 = vld [vmem:[#allocation8 + $0x50] sm:$0xff]
    %v273 = vld [vmem:[#allocation8 + $0x58] sm:$0xff]
    %v274 = vld [vmem:[#allocation8 + $0x60] sm:$0xff]
    %v275 = vld [vmem:[#allocation8 + $0x68] sm:$0xff]
    %v276 = vld [vmem:[#allocation8 + $0x70] sm:$0xff]
    %v277 = vld [vmem:[#allocation8 + $0x78] sm:$0xff]
    %v278 = vld [vmem:[#allocation8 + $0x80] sm:$0xff]
    %v279 = vld [vmem:[#allocation8 + $0x88] sm:$0xff]
    %v280 = vld [vmem:[#allocation8 + $0x90] sm:$0xff]
    %v281 = vld [vmem:[#allocation8 + $0x98] sm:$0xff]
    %v282 = vld [vmem:[#allocation8 + $0xa0] sm:$0xff]
    %v283 = vld [vmem:[#allocation8 + $0xa8] sm:$0xff]
    %v284 = vld [vmem:[#allocation8 + $0xb0] sm:$0xff]
    %v285 = vld [vmem:[#allocation8 + $0xb8] sm:$0xff]
    %v286 = vld [vmem:[#allocation8 + $0xc0] sm:$0xff]
    %v287 = vld [vmem:[#allocation8 + $0xc8] sm:$0xff]
    %v288 = vld [vmem:[#allocation8 + $0xd0] sm:$0xff]
    %v289 = vld [vmem:[#allocation8 + $0xd8] sm:$0xff]
    %v290 = vld [vmem:[#allocation8 + $0xe0] sm:$0xff]
    %v291 = vld [vmem:[#allocation8 + $0xe8] sm:$0xff]
    %v292 = vld [vmem:[#allocation8 + $0xf0] sm:$0xff]
    %v293 = vld [vmem:[#allocation8 + $0xf8] sm:$0xff]
    %v294 = vld [vmem:[#allocation8 + $0x100] sm:$0xff]
    %v295 = vld [vmem:[#allocation8 + $0x108] sm:$0xff]
    %v296 = vld [vmem:[#allocation8 + $0x110] sm:$0xff]
    %v297 = vld [vmem:[#allocation8 + $0x118] sm:$0xff]
    %v298 = vld [vmem:[#allocation8 + $0x120] sm:$0xff]
    %v299 = vld [vmem:[#allocation8 + $0x128] sm:$0xff]
    %v300 = vld [vmem:[#allocation8 + $0x130] sm:$0xff]
    %v301 = vld [vmem:[#allocation8 + $0x138] sm:$0xff]
    %v302 = vld [vmem:[#allocation8 + $0x140] sm:$0xff]
    %v303 = vld [vmem:[#allocation8 + $0x148] sm:$0xff]
    %v304 = vld [vmem:[#allocation8 + $0x150] sm:$0xff]
    %v305 = vld [vmem:[#allocation8 + $0x158] sm:$0xff]
    %v306 = vld [vmem:[#allocation8 + $0x160] sm:$0xff]
    %v307 = vld [vmem:[#allocation8 + $0x168] sm:$0xff]
    %v308 = vld [vmem:[#allocation8 + $0x170] sm:$0xff]
    %v309 = vld [vmem:[#allocation8 + $0x178] sm:$0xff]
    %v310 = vld [vmem:[#allocation8 + $0x180] sm:$0xff]
    %v311 = vld [vmem:[#allocation8 + $0x188] sm:$0xff]
    %v312 = vld [vmem:[#allocation8 + $0x190] sm:$0xff]
    %v313 = vld [vmem:[#allocation8 + $0x198] sm:$0xff]
    %v314 = vld [vmem:[#allocation8 + $0x1a0] sm:$0xff]
    %v315 = vld [vmem:[#allocation8 + $0x1a8] sm:$0xff]
    %v316 = vld [vmem:[#allocation8 + $0x1b0] sm:$0xff]
    %v317 = vld [vmem:[#allocation8 + $0x1b8] sm:$0xff]
    %v318 = vld [vmem:[#allocation8 + $0x1c0] sm:$0xff]
    %v319 = vld [vmem:[#allocation8 + $0x1c8] sm:$0xff]
    %v320 = vld [vmem:[#allocation8 + $0x1d0] sm:$0xff]
    %v321 = vld [vmem:[#allocation8 + $0x1d8] sm:$0xff]
    %v322 = vld [vmem:[#allocation8 + $0x1e0] sm:$0xff]
    %v323 = vld [vmem:[#allocation8 + $0x1e8] sm:$0xff]
    %v324 = vld [vmem:[#allocation8 + $0x1f0] sm:$0xff]
    %v325 = vld [vmem:[#allocation8 + $0x1f8] sm:$0xff]
    %v326 = vld [vmem:[#allocation8 + $0x200] sm:$0xff]
    %v327 = vld [vmem:[#allocation8 + $0x208] sm:$0xff]
    %v328 = vld [vmem:[#allocation8 + $0x210] sm:$0xff]
    %v329 = vld [vmem:[#allocation8 + $0x218] sm:$0xff]
    %v330 = vld [vmem:[#allocation8 + $0x220] sm:$0xff]
    %v331 = vld [vmem:[#allocation8 + $0x228] sm:$0xff]
    %v332 = vld [vmem:[#allocation8 + $0x230] sm:$0xff]
    %v333 = vld [vmem:[#allocation8 + $0x238] sm:$0xff]
    %v334 = vld [vmem:[#allocation8 + $0x240] sm:$0xff]
    %v335 = vld [vmem:[#allocation8 + $0x248] sm:$0xff]
    %v336 = vld [vmem:[#allocation8 + $0x250] sm:$0xff]
    %v337 = vld [vmem:[#allocation8 + $0x258] sm:$0xff]
    %v338 = vld [vmem:[#allocation8 + $0x260] sm:$0xff]
    %v339 = vld [vmem:[#allocation8 + $0x268] sm:$0xff]
    %v340 = vld [vmem:[#allocation8 + $0x270] sm:$0xff]
    %v341 = vld [vmem:[#allocation8 + $0x278] sm:$0xff]
    %v342 = vld [vmem:[#allocation8 + $0x280] sm:$0xff]
    %v343 = vld [vmem:[#allocation8 + $0x288] sm:$0xff]
    %v344 = vld [vmem:[#allocation8 + $0x290] sm:$0xff]
    %v345 = vld [vmem:[#allocation8 + $0x298] sm:$0xff]
    %v346 = vld [vmem:[#allocation8 + $0x2a0] sm:$0xff]
    %v347 = vld [vmem:[#allocation8 + $0x2a8] sm:$0xff]
    %v348 = vld [vmem:[#allocation8 + $0x2b0] sm:$0xff]
    %v349 = vld [vmem:[#allocation8 + $0x2b8] sm:$0xff]
    %v350 = vld [vmem:[#allocation8 + $0x2c0] sm:$0xff]
    %v351 = vld [vmem:[#allocation8 + $0x2c8] sm:$0xff]
    %v352 = vld [vmem:[#allocation8 + $0x2d0] sm:$0xff]
    %v353 = vld [vmem:[#allocation8 + $0x2d8] sm:$0xff]
    %v354 = vld [vmem:[#allocation8 + $0x2e0] sm:$0xff]
    %v355 = vld [vmem:[#allocation8 + $0x2e8] sm:$0xff]
    %v356 = vld [vmem:[#allocation8 + $0x2f0] sm:$0xff]
    %v357 = vld [vmem:[#allocation8 + $0x2f8] sm:$0xff]
    %v358 = vld [vmem:[#allocation8 + $0x300] sm:$0xff]
    %v359 = vld [vmem:[#allocation8 + $0x308] sm:$0xff]
    %v360 = vld [vmem:[#allocation8 + $0x310] sm:$0xff]
    %v361 = vld [vmem:[#allocation8 + $0x318] sm:$0xff]
    %v362 = vld [vmem:[#allocation8 + $0x320] sm:$0xff]
    %v363 = vld [vmem:[#allocation8 + $0x328] sm:$0xff]
    %v364 = vld [vmem:[#allocation8 + $0x330] sm:$0xff]
    %v365 = vld [vmem:[#allocation8 + $0x338] sm:$0xff]
    %v366 = vld [vmem:[#allocation8 + $0x340] sm:$0xff]
    %v367 = vld [vmem:[#allocation8 + $0x348] sm:$0xff]
    %v368 = vld [vmem:[#allocation8 + $0x350] sm:$0xff]
    %v369 = vld [vmem:[#allocation8 + $0x358] sm:$0xff]
    %v370 = vld [vmem:[#allocation8 + $0x360] sm:$0xff]
    %v371 = vld [vmem:[#allocation8 + $0x368] sm:$0xff]
    %v372 = vld [vmem:[#allocation8 + $0x370] sm:$0xff]
    %v373 = vld [vmem:[#allocation8 + $0x378] sm:$0xff]
    %v374 = vld [vmem:[#allocation8 + $0x380] sm:$0xff]
    %v375 = vld [vmem:[#allocation8 + $0x388] sm:$0xff]
    %v376 = vld [vmem:[#allocation8 + $0x390] sm:$0xff]
    %v377 = vld [vmem:[#allocation8 + $0x398] sm:$0xff]
    %v378 = vld [vmem:[#allocation8 + $0x3a0] sm:$0xff]
    %v379 = vld [vmem:[#allocation8 + $0x3a8] sm:$0xff]
    %v380 = vld [vmem:[#allocation8 + $0x3b0] sm:$0xff]
    %v381 = vld [vmem:[#allocation8 + $0x3b8] sm:$0xff]
    %v382 = vld [vmem:[#allocation8 + $0x3c0] sm:$0xff]
    %v383 = vld [vmem:[#allocation8 + $0x3c8] sm:$0xff]
    %v384 = vld [vmem:[#allocation8 + $0x3d0] sm:$0xff]
    %v385 = vld [vmem:[#allocation8 + $0x3d8] sm:$0xff]
    %v386 = vld [vmem:[#allocation8 + $0x3e0] sm:$0xff]
    %v387 = vld [vmem:[#allocation8 + $0x3e8] sm:$0xff]
    %v388 = vld [vmem:[#allocation8 + $0x3f0] sm:$0xff]
    %v389 = vld [vmem:[#allocation8 + $0x3f8] sm:$0xff]
    %v390 = vld [vmem:[#allocation10] sm:$0xf]
    %v392 = vperm.slane %v390, 0
    %v393 = vperm.slane %v390, 1
    %v394 = vperm.slane %v390, 2
    %v395 = vperm.slane %v390, 3
    %v528 = vunpack.c.l.b16 %v262
    %v529 = vunpack.c.h.b16 %v262
    %v530 = vunpack.c.l.b16 %v263
    %v531 = vunpack.c.h.b16 %v263
    %v532 = vunpack.c.l.b16 %v264
    %v533 = vunpack.c.h.b16 %v264
    %v534 = vunpack.c.l.b16 %v265
    %v535 = vunpack.c.h.b16 %v265
    %v536 = vunpack.c.l.b16 %v266
    %v537 = vunpack.c.h.b16 %v266
    %v538 = vunpack.c.l.b16 %v267
    %v539 = vunpack.c.h.b16 %v267
    %v540 = vunpack.c.l.b16 %v268
    %v541 = vunpack.c.h.b16 %v268
    %v542 = vunpack.c.l.b16 %v269
    %v543 = vunpack.c.h.b16 %v269
    %v544 = vunpack.c.l.b16 %v270
    %v545 = vunpack.c.h.b16 %v270
    %v546 = vunpack.c.l.b16 %v271
    %v547 = vunpack.c.h.b16 %v271
    %v548 = vunpack.c.l.b16 %v272
    %v549 = vunpack.c.h.b16 %v272
    %v550 = vunpack.c.l.b16 %v273
    %v551 = vunpack.c.h.b16 %v273
    %v552 = vunpack.c.l.b16 %v274
    %v553 = vunpack.c.h.b16 %v274
    %v554 = vunpack.c.l.b16 %v275
    %v555 = vunpack.c.h.b16 %v275
    %v556 = vunpack.c.l.b16 %v276
    %v557 = vunpack.c.h.b16 %v276
    %v558 = vunpack.c.l.b16 %v277
    %v559 = vunpack.c.h.b16 %v277
    %v560 = vunpack.c.l.b16 %v278
    %v561 = vunpack.c.h.b16 %v278
    %v562 = vunpack.c.l.b16 %v279
    %v563 = vunpack.c.h.b16 %v279
    %v564 = vunpack.c.l.b16 %v280
    %v565 = vunpack.c.h.b16 %v280
    %v566 = vunpack.c.l.b16 %v281
    %v567 = vunpack.c.h.b16 %v281
    %v568 = vunpack.c.l.b16 %v282
    %v569 = vunpack.c.h.b16 %v282
    %v570 = vunpack.c.l.b16 %v283
    %v571 = vunpack.c.h.b16 %v283
    %v572 = vunpack.c.l.b16 %v284
    %v573 = vunpack.c.h.b16 %v284
    %v574 = vunpack.c.l.b16 %v285
    %v575 = vunpack.c.h.b16 %v285
    %v576 = vunpack.c.l.b16 %v286
    %v577 = vunpack.c.h.b16 %v286
    %v578 = vunpack.c.l.b16 %v287
    %v579 = vunpack.c.h.b16 %v287
    %v580 = vunpack.c.l.b16 %v288
    %v581 = vunpack.c.h.b16 %v288
    %v582 = vunpack.c.l.b16 %v289
    %v583 = vunpack.c.h.b16 %v289
    %v584 = vunpack.c.l.b16 %v290
    %v585 = vunpack.c.h.b16 %v290
    %v586 = vunpack.c.l.b16 %v291
    %v587 = vunpack.c.h.b16 %v291
    %v588 = vunpack.c.l.b16 %v292
    %v589 = vunpack.c.h.b16 %v292
    %v590 = vunpack.c.l.b16 %v293
    %v591 = vunpack.c.h.b16 %v293
    %v592 = vunpack.c.l.b16 %v294
    %v593 = vunpack.c.h.b16 %v294
    %v594 = vunpack.c.l.b16 %v295
    %v595 = vunpack.c.h.b16 %v295
    %v596 = vunpack.c.l.b16 %v296
    %v597 = vunpack.c.h.b16 %v296
    %v598 = vunpack.c.l.b16 %v297
    %v599 = vunpack.c.h.b16 %v297
    %v600 = vunpack.c.l.b16 %v298
    %v601 = vunpack.c.h.b16 %v298
    %v602 = vunpack.c.l.b16 %v299
    %v603 = vunpack.c.h.b16 %v299
    %v604 = vunpack.c.l.b16 %v300
    %v605 = vunpack.c.h.b16 %v300
    %v606 = vunpack.c.l.b16 %v301
    %v607 = vunpack.c.h.b16 %v301
    %v608 = vunpack.c.l.b16 %v302
    %v609 = vunpack.c.h.b16 %v302
    %v610 = vunpack.c.l.b16 %v303
    %v611 = vunpack.c.h.b16 %v303
    %v612 = vunpack.c.l.b16 %v304
    %v613 = vunpack.c.h.b16 %v304
    %v614 = vunpack.c.l.b16 %v305
    %v615 = vunpack.c.h.b16 %v305
    %v616 = vunpack.c.l.b16 %v306
    %v617 = vunpack.c.h.b16 %v306
    %v618 = vunpack.c.l.b16 %v307
    %v619 = vunpack.c.h.b16 %v307
    %v620 = vunpack.c.l.b16 %v308
    %v621 = vunpack.c.h.b16 %v308
    %v622 = vunpack.c.l.b16 %v309
    %v623 = vunpack.c.h.b16 %v309
    %v624 = vunpack.c.l.b16 %v310
    %v625 = vunpack.c.h.b16 %v310
    %v626 = vunpack.c.l.b16 %v311
    %v627 = vunpack.c.h.b16 %v311
    %v628 = vunpack.c.l.b16 %v312
    %v629 = vunpack.c.h.b16 %v312
    %v630 = vunpack.c.l.b16 %v313
    %v631 = vunpack.c.h.b16 %v313
    %v632 = vunpack.c.l.b16 %v314
    %v633 = vunpack.c.h.b16 %v314
    %v634 = vunpack.c.l.b16 %v315
    %v635 = vunpack.c.h.b16 %v315
    %v636 = vunpack.c.l.b16 %v316
    %v637 = vunpack.c.h.b16 %v316
    %v638 = vunpack.c.l.b16 %v317
    %v639 = vunpack.c.h.b16 %v317
    %v640 = vunpack.c.l.b16 %v318
    %v641 = vunpack.c.h.b16 %v318
    %v642 = vunpack.c.l.b16 %v319
    %v643 = vunpack.c.h.b16 %v319
    %v644 = vunpack.c.l.b16 %v320
    %v645 = vunpack.c.h.b16 %v320
    %v646 = vunpack.c.l.b16 %v321
    %v647 = vunpack.c.h.b16 %v321
    %v648 = vunpack.c.l.b16 %v322
    %v649 = vunpack.c.h.b16 %v322
    %v650 = vunpack.c.l.b16 %v323
    %v651 = vunpack.c.h.b16 %v323
    %v652 = vunpack.c.l.b16 %v324
    %v653 = vunpack.c.h.b16 %v324
    %v654 = vunpack.c.l.b16 %v325
    %v655 = vunpack.c.h.b16 %v325
    %v656 = vunpack.c.l.b16 %v326
    %v657 = vunpack.c.h.b16 %v326
    %v658 = vunpack.c.l.b16 %v327
    %v659 = vunpack.c.h.b16 %v327
    %v660 = vunpack.c.l.b16 %v328
    %v661 = vunpack.c.h.b16 %v328
    %v662 = vunpack.c.l.b16 %v329
    %v663 = vunpack.c.h.b16 %v329
    %v664 = vunpack.c.l.b16 %v330
    %v665 = vunpack.c.h.b16 %v330
    %v666 = vunpack.c.l.b16 %v331
    %v667 = vunpack.c.h.b16 %v331
    %v668 = vunpack.c.l.b16 %v332
    %v669 = vunpack.c.h.b16 %v332
    %v670 = vunpack.c.l.b16 %v333
    %v671 = vunpack.c.h.b16 %v333
    %v672 = vunpack.c.l.b16 %v334
    %v673 = vunpack.c.h.b16 %v334
    %v674 = vunpack.c.l.b16 %v335
    %v675 = vunpack.c.h.b16 %v335
    %v676 = vunpack.c.l.b16 %v336
    %v677 = vunpack.c.h.b16 %v336
    %v678 = vunpack.c.l.b16 %v337
    %v679 = vunpack.c.h.b16 %v337
    %v680 = vunpack.c.l.b16 %v338
    %v681 = vunpack.c.h.b16 %v338
    %v682 = vunpack.c.l.b16 %v339
    %v683 = vunpack.c.h.b16 %v339
    %v684 = vunpack.c.l.b16 %v340
    %v685 = vunpack.c.h.b16 %v340
    %v686 = vunpack.c.l.b16 %v341
    %v687 = vunpack.c.h.b16 %v341
    %v688 = vunpack.c.l.b16 %v342
    %v689 = vunpack.c.h.b16 %v342
    %v690 = vunpack.c.l.b16 %v343
    %v691 = vunpack.c.h.b16 %v343
    %v692 = vunpack.c.l.b16 %v344
    %v693 = vunpack.c.h.b16 %v344
    %v694 = vunpack.c.l.b16 %v345
    %v695 = vunpack.c.h.b16 %v345
    %v696 = vunpack.c.l.b16 %v346
    %v697 = vunpack.c.h.b16 %v346
    %v698 = vunpack.c.l.b16 %v347
    %v699 = vunpack.c.h.b16 %v347
    %v700 = vunpack.c.l.b16 %v348
    %v701 = vunpack.c.h.b16 %v348
    %v702 = vunpack.c.l.b16 %v349
    %v703 = vunpack.c.h.b16 %v349
    %v704 = vunpack.c.l.b16 %v350
    %v705 = vunpack.c.h.b16 %v350
    %v706 = vunpack.c.l.b16 %v351
    %v707 = vunpack.c.h.b16 %v351
    %v708 = vunpack.c.l.b16 %v352
    %v709 = vunpack.c.h.b16 %v352
    %v710 = vunpack.c.l.b16 %v353
    %v711 = vunpack.c.h.b16 %v353
    %v712 = vunpack.c.l.b16 %v354
    %v713 = vunpack.c.h.b16 %v354
    %v714 = vunpack.c.l.b16 %v355
    %v715 = vunpack.c.h.b16 %v355
    %v716 = vunpack.c.l.b16 %v356
    %v717 = vunpack.c.h.b16 %v356
    %v718 = vunpack.c.l.b16 %v357
    %v719 = vunpack.c.h.b16 %v357
    %v720 = vunpack.c.l.b16 %v358
    %v721 = vunpack.c.h.b16 %v358
    %v722 = vunpack.c.l.b16 %v359
    %v723 = vunpack.c.h.b16 %v359
    %v724 = vunpack.c.l.b16 %v360
    %v725 = vunpack.c.h.b16 %v360
    %v726 = vunpack.c.l.b16 %v361
    %v727 = vunpack.c.h.b16 %v361
    %v728 = vunpack.c.l.b16 %v362
    %v729 = vunpack.c.h.b16 %v362
    %v730 = vunpack.c.l.b16 %v363
    %v731 = vunpack.c.h.b16 %v363
    %v732 = vunpack.c.l.b16 %v364
    %v733 = vunpack.c.h.b16 %v364
    %v734 = vunpack.c.l.b16 %v365
    %v735 = vunpack.c.h.b16 %v365
    %v736 = vunpack.c.l.b16 %v366
    %v737 = vunpack.c.h.b16 %v366
    %v738 = vunpack.c.l.b16 %v367
    %v739 = vunpack.c.h.b16 %v367
    %v740 = vunpack.c.l.b16 %v368
    %v741 = vunpack.c.h.b16 %v368
    %v742 = vunpack.c.l.b16 %v369
    %v743 = vunpack.c.h.b16 %v369
    %v744 = vunpack.c.l.b16 %v370
    %v745 = vunpack.c.h.b16 %v370
    %v746 = vunpack.c.l.b16 %v371
    %v747 = vunpack.c.h.b16 %v371
    %v748 = vunpack.c.l.b16 %v372
    %v749 = vunpack.c.h.b16 %v372
    %v750 = vunpack.c.l.b16 %v373
    %v751 = vunpack.c.h.b16 %v373
    %v752 = vunpack.c.l.b16 %v374
    %v753 = vunpack.c.h.b16 %v374
    %v754 = vunpack.c.l.b16 %v375
    %v755 = vunpack.c.h.b16 %v375
    %v756 = vunpack.c.l.b16 %v376
    %v757 = vunpack.c.h.b16 %v376
    %v758 = vunpack.c.l.b16 %v377
    %v759 = vunpack.c.h.b16 %v377
    %v760 = vunpack.c.l.b16 %v378
    %v761 = vunpack.c.h.b16 %v378
    %v762 = vunpack.c.l.b16 %v379
    %v763 = vunpack.c.h.b16 %v379
    %v764 = vunpack.c.l.b16 %v380
    %v765 = vunpack.c.h.b16 %v380
    %v766 = vunpack.c.l.b16 %v381
    %v767 = vunpack.c.h.b16 %v381
    %v768 = vunpack.c.l.b16 %v382
    %v769 = vunpack.c.h.b16 %v382
    %v770 = vunpack.c.l.b16 %v383
    %v771 = vunpack.c.h.b16 %v383
    %v772 = vunpack.c.l.b16 %v384
    %v773 = vunpack.c.h.b16 %v384
    %v774 = vunpack.c.l.b16 %v385
    %v775 = vunpack.c.h.b16 %v385
    %v776 = vunpack.c.l.b16 %v386
    %v777 = vunpack.c.h.b16 %v386
    %v778 = vunpack.c.l.b16 %v387
    %v779 = vunpack.c.h.b16 %v387
    %v780 = vunpack.c.l.b16 %v388
    %v781 = vunpack.c.h.b16 %v388
    %v782 = vunpack.c.l.b16 %v389
    %v783 = vunpack.c.h.b16 %v389
    %v784 = vpack.c.b16 %v532, %v528
    %v785 = vpack.c.b16 %v533, %v529
    %v786 = vpack.c.b16 %v534, %v530
    %v787 = vpack.c.b16 %v535, %v531
    %v788 = vpack.c.b16 %v540, %v536
    %v789 = vpack.c.b16 %v541, %v537
    %v790 = vpack.c.b16 %v542, %v538
    %v791 = vpack.c.b16 %v543, %v539
    %v792 = vpack.c.b16 %v548, %v544
    %v793 = vpack.c.b16 %v549, %v545
    %v794 = vpack.c.b16 %v550, %v546
    %v795 = vpack.c.b16 %v551, %v547
    %v796 = vpack.c.b16 %v556, %v552
    %v797 = vpack.c.b16 %v557, %v553
    %v798 = vpack.c.b16 %v558, %v554
    %v799 = vpack.c.b16 %v559, %v555
    %v800 = vpack.c.b16 %v564, %v560
    %v801 = vpack.c.b16 %v565, %v561
    %v802 = vpack.c.b16 %v566, %v562
    %v803 = vpack.c.b16 %v567, %v563
    %v804 = vpack.c.b16 %v572, %v568
    %v805 = vpack.c.b16 %v573, %v569
    %v806 = vpack.c.b16 %v574, %v570
    %v807 = vpack.c.b16 %v575, %v571
    %v808 = vpack.c.b16 %v580, %v576
    %v809 = vpack.c.b16 %v581, %v577
    %v810 = vpack.c.b16 %v582, %v578
    %v811 = vpack.c.b16 %v583, %v579
    %v812 = vpack.c.b16 %v588, %v584
    %v813 = vpack.c.b16 %v589, %v585
    %v814 = vpack.c.b16 %v590, %v586
    %v815 = vpack.c.b16 %v591, %v587
    %v816 = vpack.c.b16 %v596, %v592
    %v817 = vpack.c.b16 %v597, %v593
    %v818 = vpack.c.b16 %v598, %v594
    %v819 = vpack.c.b16 %v599, %v595
    %v820 = vpack.c.b16 %v604, %v600
    %v821 = vpack.c.b16 %v605, %v601
    %v822 = vpack.c.b16 %v606, %v602
    %v823 = vpack.c.b16 %v607, %v603
    %v824 = vpack.c.b16 %v612, %v608
    %v825 = vpack.c.b16 %v613, %v609
    %v826 = vpack.c.b16 %v614, %v610
    %v827 = vpack.c.b16 %v615, %v611
    %v828 = vpack.c.b16 %v620, %v616
    %v829 = vpack.c.b16 %v621, %v617
    %v830 = vpack.c.b16 %v622, %v618
    %v831 = vpack.c.b16 %v623, %v619
    %v832 = vpack.c.b16 %v628, %v624
    %v833 = vpack.c.b16 %v629, %v625
    %v834 = vpack.c.b16 %v630, %v626
    %v835 = vpack.c.b16 %v631, %v627
    %v836 = vpack.c.b16 %v636, %v632
    %v837 = vpack.c.b16 %v637, %v633
    %v838 = vpack.c.b16 %v638, %v634
    %v839 = vpack.c.b16 %v639, %v635
    %v840 = vpack.c.b16 %v644, %v640
    %v841 = vpack.c.b16 %v645, %v641
    %v842 = vpack.c.b16 %v646, %v642
    %v843 = vpack.c.b16 %v647, %v643
    %v844 = vpack.c.b16 %v652, %v648
    %v845 = vpack.c.b16 %v653, %v649
    %v846 = vpack.c.b16 %v654, %v650
    %v847 = vpack.c.b16 %v655, %v651
    %v848 = vpack.c.b16 %v660, %v656
    %v849 = vpack.c.b16 %v661, %v657
    %v850 = vpack.c.b16 %v662, %v658
    %v851 = vpack.c.b16 %v663, %v659
    %v852 = vpack.c.b16 %v668, %v664
    %v853 = vpack.c.b16 %v669, %v665
    %v854 = vpack.c.b16 %v670, %v666
    %v855 = vpack.c.b16 %v671, %v667
    %v856 = vpack.c.b16 %v676, %v672
    %v857 = vpack.c.b16 %v677, %v673
    %v858 = vpack.c.b16 %v678, %v674
    %v859 = vpack.c.b16 %v679, %v675
    %v860 = vpack.c.b16 %v684, %v680
    %v861 = vpack.c.b16 %v685, %v681
    %v862 = vpack.c.b16 %v686, %v682
    %v863 = vpack.c.b16 %v687, %v683
    %v864 = vpack.c.b16 %v692, %v688
    %v865 = vpack.c.b16 %v693, %v689
    %v866 = vpack.c.b16 %v694, %v690
    %v867 = vpack.c.b16 %v695, %v691
    %v868 = vpack.c.b16 %v700, %v696
    %v869 = vpack.c.b16 %v701, %v697
    %v870 = vpack.c.b16 %v702, %v698
    %v871 = vpack.c.b16 %v703, %v699
    %v872 = vpack.c.b16 %v708, %v704
    %v873 = vpack.c.b16 %v709, %v705
    %v874 = vpack.c.b16 %v710, %v706
    %v875 = vpack.c.b16 %v711, %v707
    %v876 = vpack.c.b16 %v716, %v712
    %v877 = vpack.c.b16 %v717, %v713
    %v878 = vpack.c.b16 %v718, %v714
    %v879 = vpack.c.b16 %v719, %v715
    %v880 = vpack.c.b16 %v724, %v720
    %v881 = vpack.c.b16 %v725, %v721
    %v882 = vpack.c.b16 %v726, %v722
    %v883 = vpack.c.b16 %v727, %v723
    %v884 = vpack.c.b16 %v732, %v728
    %v885 = vpack.c.b16 %v733, %v729
    %v886 = vpack.c.b16 %v734, %v730
    %v887 = vpack.c.b16 %v735, %v731
    %v888 = vpack.c.b16 %v740, %v736
    %v889 = vpack.c.b16 %v741, %v737
    %v890 = vpack.c.b16 %v742, %v738
    %v891 = vpack.c.b16 %v743, %v739
    %v892 = vpack.c.b16 %v748, %v744
    %v893 = vpack.c.b16 %v749, %v745
    %v894 = vpack.c.b16 %v750, %v746
    %v895 = vpack.c.b16 %v751, %v747
    %v896 = vpack.c.b16 %v756, %v752
    %v897 = vpack.c.b16 %v757, %v753
    %v898 = vpack.c.b16 %v758, %v754
    %v899 = vpack.c.b16 %v759, %v755
    %v900 = vpack.c.b16 %v764, %v760
    %v901 = vpack.c.b16 %v765, %v761
    %v902 = vpack.c.b16 %v766, %v762
    %v903 = vpack.c.b16 %v767, %v763
    %v904 = vpack.c.b16 %v772, %v768
    %v905 = vpack.c.b16 %v773, %v769
    %v906 = vpack.c.b16 %v774, %v770
    %v907 = vpack.c.b16 %v775, %v771
    %v908 = vpack.c.b16 %v780, %v776
    %v909 = vpack.c.b16 %v781, %v777
    %v910 = vpack.c.b16 %v782, %v778
    %v911 = vpack.c.b16 %v783, %v779
    %1040 = vmatpush.bf16.msra.mxu0 %v812
    %1041 = vmatpush.bf16.msra.mxu0 %v808
    %1042 = vmatpush.bf16.msra.mxu0 %v804
    %1043 = vmatpush.bf16.msra.mxu0 %v800
    %1044 = vmatpush.bf16.msra.mxu0 %v796
    %1045 = vmatpush.bf16.msra.mxu0 %v792
    %1046 = vmatpush.bf16.msra.mxu0 %v788
    %1047 = vmatpush.bf16.msra.mxu0 %v784
    %1048 = vmatmul.bf16.gmra.mxu0 %v258
    %v1049 = vpop.f32.mrf.mxu0
    %v1050 = vadd.f32 %v392, %v1049
    %v1051 = vpop.f32.mrf.mxu0
    %1052 = vdwg.mxu0
    %1053 = vmatpush.bf16.msra.mxu0 %v844
    %1054 = vmatpush.bf16.msra.mxu0 %v840
    %1055 = vmatpush.bf16.msra.mxu0 %v836
    %1056 = vmatpush.bf16.msra.mxu0 %v832
    %1057 = vmatpush.bf16.msra.mxu0 %v828
    %1058 = vmatpush.bf16.msra.mxu0 %v824
    %1059 = vmatpush.bf16.msra.mxu0 %v820
    %1060 = vmatpush.bf16.msra.mxu0 %v816
    %1061 = vmatmul.bf16.gmra.mxu0 %v259
    %v1062 = vpop.f32.mrf.mxu0
    %v1063 = vadd.f32 %v1050, %v1062
    %v1064 = vpop.f32.mrf.mxu0
    %1065 = vdwg.mxu0
    %1066 = vmatpush.bf16.msra.mxu0 %v876
    %1067 = vmatpush.bf16.msra.mxu0 %v872
    %1068 = vmatpush.bf16.msra.mxu0 %v868
    %1069 = vmatpush.bf16.msra.mxu0 %v864
    %1070 = vmatpush.bf16.msra.mxu0 %v860
    %1071 = vmatpush.bf16.msra.mxu0 %v856
    %1072 = vmatpush.bf16.msra.mxu0 %v852
    %1073 = vmatpush.bf16.msra.mxu0 %v848
    %1074 = vmatmul.bf16.gmra.mxu0 %v260
    %v1075 = vpop.f32.mrf.mxu0
    %v1076 = vadd.f32 %v1063, %v1075
    %v1077 = vpop.f32.mrf.mxu0
    %1078 = vdwg.mxu0
    %1079 = vmatpush.bf16.msra.mxu0 %v908
    %1080 = vmatpush.bf16.msra.mxu0 %v904
    %1081 = vmatpush.bf16.msra.mxu0 %v900
    %1082 = vmatpush.bf16.msra.mxu0 %v896
    %1083 = vmatpush.bf16.msra.mxu0 %v892
    %1084 = vmatpush.bf16.msra.mxu0 %v888
    %1085 = vmatpush.bf16.msra.mxu0 %v884
    %1086 = vmatpush.bf16.msra.mxu0 %v880
    %1087 = vmatmul.bf16.gmra.mxu0 %v261
    %v1088 = vpop.f32.mrf.mxu0
    %v1089 = vadd.f32 %v1076, %v1088
    %v1090 = vpop.f32.mrf.mxu0
    %1091 = vdwg.mxu0
    %1092 = vmatpush.bf16.msra.mxu0 %v813
    %1093 = vmatpush.bf16.msra.mxu0 %v809
    %1094 = vmatpush.bf16.msra.mxu0 %v805
    %1095 = vmatpush.bf16.msra.mxu0 %v801
    %1096 = vmatpush.bf16.msra.mxu0 %v797
    %1097 = vmatpush.bf16.msra.mxu0 %v793
    %1098 = vmatpush.bf16.msra.mxu0 %v789
    %1099 = vmatpush.bf16.msra.mxu0 %v785
    %1100 = vmatmul.bf16.gmra.mxu0 %v258
    %v1101 = vpop.f32.mrf.mxu0
    %v1102 = vadd.f32 %v393, %v1101
    %v1103 = vpop.f32.mrf.mxu0
    %1104 = vdwg.mxu0
    %1105 = vmatpush.bf16.msra.mxu0 %v845
    %1106 = vmatpush.bf16.msra.mxu0 %v841
    %1107 = vmatpush.bf16.msra.mxu0 %v837
    %1108 = vmatpush.bf16.msra.mxu0 %v833
    %1109 = vmatpush.bf16.msra.mxu0 %v829
    %1110 = vmatpush.bf16.msra.mxu0 %v825
    %1111 = vmatpush.bf16.msra.mxu0 %v821
    %1112 = vmatpush.bf16.msra.mxu0 %v817
    %1113 = vmatmul.bf16.gmra.mxu0 %v259
    %v1114 = vpop.f32.mrf.mxu0
    %v1115 = vadd.f32 %v1102, %v1114
    %v1116 = vpop.f32.mrf.mxu0
    %1117 = vdwg.mxu0
    %1118 = vmatpush.bf16.msra.mxu0 %v877
    %1119 = vmatpush.bf16.msra.mxu0 %v873
    %1120 = vmatpush.bf16.msra.mxu0 %v869
    %1121 = vmatpush.bf16.msra.mxu0 %v865
    %1122 = vmatpush.bf16.msra.mxu0 %v861
    %1123 = vmatpush.bf16.msra.mxu0 %v857
    %1124 = vmatpush.bf16.msra.mxu0 %v853
    %1125 = vmatpush.bf16.msra.mxu0 %v849
    %1126 = vmatmul.bf16.gmra.mxu0 %v260
    %v1127 = vpop.f32.mrf.mxu0
    %v1128 = vadd.f32 %v1115, %v1127
    %v1129 = vpop.f32.mrf.mxu0
    %1130 = vdwg.mxu0
    %1131 = vmatpush.bf16.msra.mxu0 %v909
    %1132 = vmatpush.bf16.msra.mxu0 %v905
    %1133 = vmatpush.bf16.msra.mxu0 %v901
    %1134 = vmatpush.bf16.msra.mxu0 %v897
    %1135 = vmatpush.bf16.msra.mxu0 %v893
    %1136 = vmatpush.bf16.msra.mxu0 %v889
    %1137 = vmatpush.bf16.msra.mxu0 %v885
    %1138 = vmatpush.bf16.msra.mxu0 %v881
    %1139 = vmatmul.bf16.gmra.mxu0 %v261
    %v1140 = vpop.f32.mrf.mxu0
    %v1141 = vadd.f32 %v1128, %v1140
    %v1142 = vpop.f32.mrf.mxu0
    %1143 = vdwg.mxu0
    %1144 = vmatpush.bf16.msra.mxu0 %v814
    %1145 = vmatpush.bf16.msra.mxu0 %v810
    %1146 = vmatpush.bf16.msra.mxu0 %v806
    %1147 = vmatpush.bf16.msra.mxu0 %v802
    %1148 = vmatpush.bf16.msra.mxu0 %v798
    %1149 = vmatpush.bf16.msra.mxu0 %v794
    %1150 = vmatpush.bf16.msra.mxu0 %v790
    %1151 = vmatpush.bf16.msra.mxu0 %v786
    %1152 = vmatmul.bf16.gmra.mxu0 %v258
    %v1153 = vpop.f32.mrf.mxu0
    %v1154 = vadd.f32 %v394, %v1153
    %v1155 = vpop.f32.mrf.mxu0
    %1156 = vdwg.mxu0
    %1157 = vmatpush.bf16.msra.mxu0 %v846
    %1158 = vmatpush.bf16.msra.mxu0 %v842
    %1159 = vmatpush.bf16.msra.mxu0 %v838
    %1160 = vmatpush.bf16.msra.mxu0 %v834
    %1161 = vmatpush.bf16.msra.mxu0 %v830
    %1162 = vmatpush.bf16.msra.mxu0 %v826
    %1163 = vmatpush.bf16.msra.mxu0 %v822
    %1164 = vmatpush.bf16.msra.mxu0 %v818
    %1165 = vmatmul.bf16.gmra.mxu0 %v259
    %v1166 = vpop.f32.mrf.mxu0
    %v1167 = vadd.f32 %v1154, %v1166
    %v1168 = vpop.f32.mrf.mxu0
    %1169 = vdwg.mxu0
    %1170 = vmatpush.bf16.msra.mxu0 %v878
    %1171 = vmatpush.bf16.msra.mxu0 %v874
    %1172 = vmatpush.bf16.msra.mxu0 %v870
    %1173 = vmatpush.bf16.msra.mxu0 %v866
    %1174 = vmatpush.bf16.msra.mxu0 %v862
    %1175 = vmatpush.bf16.msra.mxu0 %v858
    %1176 = vmatpush.bf16.msra.mxu0 %v854
    %1177 = vmatpush.bf16.msra.mxu0 %v850
    %1178 = vmatmul.bf16.gmra.mxu0 %v260
    %v1179 = vpop.f32.mrf.mxu0
    %v1180 = vadd.f32 %v1167, %v1179
    %v1181 = vpop.f32.mrf.mxu0
    %1182 = vdwg.mxu0
    %1183 = vmatpush.bf16.msra.mxu0 %v910
    %1184 = vmatpush.bf16.msra.mxu0 %v906
    %1185 = vmatpush.bf16.msra.mxu0 %v902
    %1186 = vmatpush.bf16.msra.mxu0 %v898
    %1187 = vmatpush.bf16.msra.mxu0 %v894
    %1188 = vmatpush.bf16.msra.mxu0 %v890
    %1189 = vmatpush.bf16.msra.mxu0 %v886
    %1190 = vmatpush.bf16.msra.mxu0 %v882
    %1191 = vmatmul.bf16.gmra.mxu0 %v261
    %v1192 = vpop.f32.mrf.mxu0
    %v1193 = vadd.f32 %v1180, %v1192
    %v1194 = vpop.f32.mrf.mxu0
    %1195 = vdwg.mxu0
    %1196 = vmatpush.bf16.msra.mxu0 %v815
    %1197 = vmatpush.bf16.msra.mxu0 %v811
    %1198 = vmatpush.bf16.msra.mxu0 %v807
    %1199 = vmatpush.bf16.msra.mxu0 %v803
    %1200 = vmatpush.bf16.msra.mxu0 %v799
    %1201 = vmatpush.bf16.msra.mxu0 %v795
    %1202 = vmatpush.bf16.msra.mxu0 %v791
    %1203 = vmatpush.bf16.msra.mxu0 %v787
    %1204 = vmatmul.bf16.gmra.mxu0 %v258
    %v1205 = vpop.f32.mrf.mxu0
    %v1206 = vadd.f32 %v395, %v1205
    %v1207 = vpop.f32.mrf.mxu0
    %1208 = vdwg.mxu0
    %1209 = vmatpush.bf16.msra.mxu0 %v847
    %1210 = vmatpush.bf16.msra.mxu0 %v843
    %1211 = vmatpush.bf16.msra.mxu0 %v839
    %1212 = vmatpush.bf16.msra.mxu0 %v835
    %1213 = vmatpush.bf16.msra.mxu0 %v831
    %1214 = vmatpush.bf16.msra.mxu0 %v827
    %1215 = vmatpush.bf16.msra.mxu0 %v823
    %1216 = vmatpush.bf16.msra.mxu0 %v819
    %1217 = vmatmul.bf16.gmra.mxu0 %v259
    %v1218 = vpop.f32.mrf.mxu0
    %v1219 = vadd.f32 %v1206, %v1218
    %v1220 = vpop.f32.mrf.mxu0
    %1221 = vdwg.mxu0
    %1222 = vmatpush.bf16.msra.mxu0 %v879
    %1223 = vmatpush.bf16.msra.mxu0 %v875
    %1224 = vmatpush.bf16.msra.mxu0 %v871
    %1225 = vmatpush.bf16.msra.mxu0 %v867
    %1226 = vmatpush.bf16.msra.mxu0 %v863
    %1227 = vmatpush.bf16.msra.mxu0 %v859
    %1228 = vmatpush.bf16.msra.mxu0 %v855
    %1229 = vmatpush.bf16.msra.mxu0 %v851
    %1230 = vmatmul.bf16.gmra.mxu0 %v260
    %v1231 = vpop.f32.mrf.mxu0
    %v1232 = vadd.f32 %v1219, %v1231
    %v1233 = vpop.f32.mrf.mxu0
    %1234 = vdwg.mxu0
    %1235 = vmatpush.bf16.msra.mxu0 %v911
    %1236 = vmatpush.bf16.msra.mxu0 %v907
    %1237 = vmatpush.bf16.msra.mxu0 %v903
    %1238 = vmatpush.bf16.msra.mxu0 %v899
    %1239 = vmatpush.bf16.msra.mxu0 %v895
    %1240 = vmatpush.bf16.msra.mxu0 %v891
    %1241 = vmatpush.bf16.msra.mxu0 %v887
    %1242 = vmatpush.bf16.msra.mxu0 %v883
    %1243 = vmatmul.bf16.gmra.mxu0 %v261
    %v1244 = vpop.f32.mrf.mxu0
    %v1245 = vadd.f32 %v1232, %v1244
    %v1246 = vpop.f32.mrf.mxu0
    %1247 = vdwg.mxu0
    %v1248 = vmax.f32 %v1089, 0.0
    %v1249 = vmax.f32 %v1141, 0.0
    %v1250 = vmax.f32 %v1193, 0.0
    %v1251 = vmax.f32 %v1245, 0.0
    %v1252 = vpack.c.bf16 %v1248, %v1248
    %v1253 = vpack.c.bf16 %v1249, %v1249
    %v1254 = vpack.c.bf16 %v1250, %v1250
    %v1255 = vpack.c.bf16 %v1251, %v1251
    %v1256 = vld [vmem:[#allocation11] sm:$0xff]
    %v1257 = vld [vmem:[#allocation11 + $0x8] sm:$0xf]
    %v1258 = vld [vmem:[#allocation11 + $0xc] sm:$0xff]
    %v1259 = vld [vmem:[#allocation11 + $0x14] sm:$0xf]
    %v1260 = vld [vmem:[#allocation11 + $0x18] sm:$0xff]
    %v1261 = vld [vmem:[#allocation11 + $0x20] sm:$0xf]
    %v1262 = vld [vmem:[#allocation11 + $0x24] sm:$0xff]
    %v1263 = vld [vmem:[#allocation11 + $0x2c] sm:$0xf]
    %v1264 = vld [vmem:[#allocation11 + $0x30] sm:$0xff]
    %v1265 = vld [vmem:[#allocation11 + $0x38] sm:$0xf]
    %v1266 = vld [vmem:[#allocation11 + $0x3c] sm:$0xff]
    %v1267 = vld [vmem:[#allocation11 + $0x44] sm:$0xf]
    %v1268 = vld [vmem:[#allocation11 + $0x48] sm:$0xff]
    %v1269 = vld [vmem:[#allocation11 + $0x50] sm:$0xf]
    %v1270 = vld [vmem:[#allocation11 + $0x54] sm:$0xff]
    %v1271 = vld [vmem:[#allocation11 + $0x5c] sm:$0xf]
    %v1272 = vld [vmem:[#allocation11 + $0x60] sm:$0xff]
    %v1273 = vld [vmem:[#allocation11 + $0x68] sm:$0xf]
    %v1274 = vld [vmem:[#allocation11 + $0x6c] sm:$0xff]
    %v1275 = vld [vmem:[#allocation11 + $0x74] sm:$0xf]
    %v1276 = vld [vmem:[#allocation11 + $0x78] sm:$0xff]
    %v1277 = vld [vmem:[#allocation11 + $0x80] sm:$0xf]
    %v1278 = vld [vmem:[#allocation11 + $0x84] sm:$0xff]
    %v1279 = vld [vmem:[#allocation11 + $0x8c] sm:$0xf]
    %v1280 = vld [vmem:[#allocation11 + $0x90] sm:$0xff]
    %v1281 = vld [vmem:[#allocation11 + $0x98] sm:$0xf]
    %v1282 = vld [vmem:[#allocation11 + $0x9c] sm:$0xff]
    %v1283 = vld [vmem:[#allocation11 + $0xa4] sm:$0xf]
    %v1284 = vld [vmem:[#allocation11 + $0xa8] sm:$0xff]
    %v1285 = vld [vmem:[#allocation11 + $0xb0] sm:$0xf]
    %v1286 = vld [vmem:[#allocation11 + $0xb4] sm:$0xff]
    %v1287 = vld [vmem:[#allocation11 + $0xbc] sm:$0xf]
    %v1288 = vld [vmem:[#allocation11 + $0xc0] sm:$0xff]
    %v1289 = vld [vmem:[#allocation11 + $0xc8] sm:$0xf]
    %v1290 = vld [vmem:[#allocation11 + $0xcc] sm:$0xff]
    %v1291 = vld [vmem:[#allocation11 + $0xd4] sm:$0xf]
    %v1292 = vld [vmem:[#allocation11 + $0xd8] sm:$0xff]
    %v1293 = vld [vmem:[#allocation11 + $0xe0] sm:$0xf]
    %v1294 = vld [vmem:[#allocation11 + $0xe4] sm:$0xff]
    %v1295 = vld [vmem:[#allocation11 + $0xec] sm:$0xf]
    %v1296 = vld [vmem:[#allocation11 + $0xf0] sm:$0xff]
    %v1297 = vld [vmem:[#allocation11 + $0xf8] sm:$0xf]
    %v1298 = vld [vmem:[#allocation11 + $0xfc] sm:$0xff]
    %v1299 = vld [vmem:[#allocation11 + $0x104] sm:$0xf]
    %v1300 = vld [vmem:[#allocation11 + $0x108] sm:$0xff]
    %v1301 = vld [vmem:[#allocation11 + $0x110] sm:$0xf]
    %v1302 = vld [vmem:[#allocation11 + $0x114] sm:$0xff]
    %v1303 = vld [vmem:[#allocation11 + $0x11c] sm:$0xf]
    %v1304 = vld [vmem:[#allocation11 + $0x120] sm:$0xff]
    %v1305 = vld [vmem:[#allocation11 + $0x128] sm:$0xf]
    %v1306 = vld [vmem:[#allocation11 + $0x12c] sm:$0xff]
    %v1307 = vld [vmem:[#allocation11 + $0x134] sm:$0xf]
    %v1308 = vld [vmem:[#allocation11 + $0x138] sm:$0xff]
    %v1309 = vld [vmem:[#allocation11 + $0x140] sm:$0xf]
    %v1310 = vld [vmem:[#allocation11 + $0x144] sm:$0xff]
    %v1311 = vld [vmem:[#allocation11 + $0x14c] sm:$0xf]
    %v1312 = vld [vmem:[#allocation11 + $0x150] sm:$0xff]
    %v1313 = vld [vmem:[#allocation11 + $0x158] sm:$0xf]
    %v1314 = vld [vmem:[#allocation11 + $0x15c] sm:$0xff]
    %v1315 = vld [vmem:[#allocation11 + $0x164] sm:$0xf]
    %v1316 = vld [vmem:[#allocation11 + $0x168] sm:$0xff]
    %v1317 = vld [vmem:[#allocation11 + $0x170] sm:$0xf]
    %v1318 = vld [vmem:[#allocation11 + $0x174] sm:$0xff]
    %v1319 = vld [vmem:[#allocation11 + $0x17c] sm:$0xf]
    %v1320 = vld [vmem:[#allocation11 + $0x180] sm:$0xff]
    %v1321 = vld [vmem:[#allocation11 + $0x188] sm:$0xf]
    %v1322 = vld [vmem:[#allocation11 + $0x18c] sm:$0xff]
    %v1323 = vld [vmem:[#allocation11 + $0x194] sm:$0xf]
    %v1324 = vld [vmem:[#allocation11 + $0x198] sm:$0xff]
    %v1325 = vld [vmem:[#allocation11 + $0x1a0] sm:$0xf]
    %v1326 = vld [vmem:[#allocation11 + $0x1a4] sm:$0xff]
    %v1327 = vld [vmem:[#allocation11 + $0x1ac] sm:$0xf]
    %v1328 = vld [vmem:[#allocation11 + $0x1b0] sm:$0xff]
    %v1329 = vld [vmem:[#allocation11 + $0x1b8] sm:$0xf]
    %v1330 = vld [vmem:[#allocation11 + $0x1bc] sm:$0xff]
    %v1331 = vld [vmem:[#allocation11 + $0x1c4] sm:$0xf]
    %v1332 = vld [vmem:[#allocation11 + $0x1c8] sm:$0xff]
    %v1333 = vld [vmem:[#allocation11 + $0x1d0] sm:$0xf]
    %v1334 = vld [vmem:[#allocation11 + $0x1d4] sm:$0xff]
    %v1335 = vld [vmem:[#allocation11 + $0x1dc] sm:$0xf]
    %v1336 = vld [vmem:[#allocation11 + $0x1e0] sm:$0xff]
    %v1337 = vld [vmem:[#allocation11 + $0x1e8] sm:$0xf]
    %v1338 = vld [vmem:[#allocation11 + $0x1ec] sm:$0xff]
    %v1339 = vld [vmem:[#allocation11 + $0x1f4] sm:$0xf]
    %v1340 = vld [vmem:[#allocation11 + $0x1f8] sm:$0xff]
    %v1341 = vld [vmem:[#allocation11 + $0x200] sm:$0xf]
    %v1342 = vld [vmem:[#allocation11 + $0x204] sm:$0xff]
    %v1343 = vld [vmem:[#allocation11 + $0x20c] sm:$0xf]
    %v1344 = vld [vmem:[#allocation11 + $0x210] sm:$0xff]
    %v1345 = vld [vmem:[#allocation11 + $0x218] sm:$0xf]
    %v1346 = vld [vmem:[#allocation11 + $0x21c] sm:$0xff]
    %v1347 = vld [vmem:[#allocation11 + $0x224] sm:$0xf]
    %v1348 = vld [vmem:[#allocation11 + $0x228] sm:$0xff]
    %v1349 = vld [vmem:[#allocation11 + $0x230] sm:$0xf]
    %v1350 = vld [vmem:[#allocation11 + $0x234] sm:$0xff]
    %v1351 = vld [vmem:[#allocation11 + $0x23c] sm:$0xf]
    %v1352 = vld [vmem:[#allocation11 + $0x240] sm:$0xff]
    %v1353 = vld [vmem:[#allocation11 + $0x248] sm:$0xf]
    %v1354 = vld [vmem:[#allocation11 + $0x24c] sm:$0xff]
    %v1355 = vld [vmem:[#allocation11 + $0x254] sm:$0xf]
    %v1356 = vld [vmem:[#allocation11 + $0x258] sm:$0xff]
    %v1357 = vld [vmem:[#allocation11 + $0x260] sm:$0xf]
    %v1358 = vld [vmem:[#allocation11 + $0x264] sm:$0xff]
    %v1359 = vld [vmem:[#allocation11 + $0x26c] sm:$0xf]
    %v1360 = vld [vmem:[#allocation11 + $0x270] sm:$0xff]
    %v1361 = vld [vmem:[#allocation11 + $0x278] sm:$0xf]
    %v1362 = vld [vmem:[#allocation11 + $0x27c] sm:$0xff]
    %v1363 = vld [vmem:[#allocation11 + $0x284] sm:$0xf]
    %v1364 = vld [vmem:[#allocation11 + $0x288] sm:$0xff]
    %v1365 = vld [vmem:[#allocation11 + $0x290] sm:$0xf]
    %v1366 = vld [vmem:[#allocation11 + $0x294] sm:$0xff]
    %v1367 = vld [vmem:[#allocation11 + $0x29c] sm:$0xf]
    %v1368 = vld [vmem:[#allocation11 + $0x2a0] sm:$0xff]
    %v1369 = vld [vmem:[#allocation11 + $0x2a8] sm:$0xf]
    %v1370 = vld [vmem:[#allocation11 + $0x2ac] sm:$0xff]
    %v1371 = vld [vmem:[#allocation11 + $0x2b4] sm:$0xf]
    %v1372 = vld [vmem:[#allocation11 + $0x2b8] sm:$0xff]
    %v1373 = vld [vmem:[#allocation11 + $0x2c0] sm:$0xf]
    %v1374 = vld [vmem:[#allocation11 + $0x2c4] sm:$0xff]
    %v1375 = vld [vmem:[#allocation11 + $0x2cc] sm:$0xf]
    %v1376 = vld [vmem:[#allocation11 + $0x2d0] sm:$0xff]
    %v1377 = vld [vmem:[#allocation11 + $0x2d8] sm:$0xf]
    %v1378 = vld [vmem:[#allocation11 + $0x2dc] sm:$0xff]
    %v1379 = vld [vmem:[#allocation11 + $0x2e4] sm:$0xf]
    %v1380 = vld [vmem:[#allocation11 + $0x2e8] sm:$0xff]
    %v1381 = vld [vmem:[#allocation11 + $0x2f0] sm:$0xf]
    %v1382 = vld [vmem:[#allocation11 + $0x2f4] sm:$0xff]
    %v1383 = vld [vmem:[#allocation11 + $0x2fc] sm:$0xf]
    %v1384 = vld [vmem:[%s6] sm:$0x7]
    %v1386 = vperm.slane %v1384, 0
    %v1387 = vperm.slane %v1384, 1
    %v1388 = vperm.slane %v1384, 2
    %v1520 = vunpack.c.l.b16 %v1256
    %v1521 = vunpack.c.h.b16 %v1256
    %v1522 = vunpack.c.l.b16 %v1257
    %v1523 = vunpack.c.l.b16 %v1258
    %v1524 = vunpack.c.h.b16 %v1258
    %v1525 = vunpack.c.l.b16 %v1259
    %v1526 = vunpack.c.l.b16 %v1260
    %v1527 = vunpack.c.h.b16 %v1260
    %v1528 = vunpack.c.l.b16 %v1261
    %v1529 = vunpack.c.l.b16 %v1262
    %v1530 = vunpack.c.h.b16 %v1262
    %v1531 = vunpack.c.l.b16 %v1263
    %v1532 = vunpack.c.l.b16 %v1264
    %v1533 = vunpack.c.h.b16 %v1264
    %v1534 = vunpack.c.l.b16 %v1265
    %v1535 = vunpack.c.l.b16 %v1266
    %v1536 = vunpack.c.h.b16 %v1266
    %v1537 = vunpack.c.l.b16 %v1267
    %v1538 = vunpack.c.l.b16 %v1268
    %v1539 = vunpack.c.h.b16 %v1268
    %v1540 = vunpack.c.l.b16 %v1269
    %v1541 = vunpack.c.l.b16 %v1270
    %v1542 = vunpack.c.h.b16 %v1270
    %v1543 = vunpack.c.l.b16 %v1271
    %v1544 = vunpack.c.l.b16 %v1272
    %v1545 = vunpack.c.h.b16 %v1272
    %v1546 = vunpack.c.l.b16 %v1273
    %v1547 = vunpack.c.l.b16 %v1274
    %v1548 = vunpack.c.h.b16 %v1274
    %v1549 = vunpack.c.l.b16 %v1275
    %v1550 = vunpack.c.l.b16 %v1276
    %v1551 = vunpack.c.h.b16 %v1276
    %v1552 = vunpack.c.l.b16 %v1277
    %v1553 = vunpack.c.l.b16 %v1278
    %v1554 = vunpack.c.h.b16 %v1278
    %v1555 = vunpack.c.l.b16 %v1279
    %v1556 = vunpack.c.l.b16 %v1280
    %v1557 = vunpack.c.h.b16 %v1280
    %v1558 = vunpack.c.l.b16 %v1281
    %v1559 = vunpack.c.l.b16 %v1282
    %v1560 = vunpack.c.h.b16 %v1282
    %v1561 = vunpack.c.l.b16 %v1283
    %v1562 = vunpack.c.l.b16 %v1284
    %v1563 = vunpack.c.h.b16 %v1284
    %v1564 = vunpack.c.l.b16 %v1285
    %v1565 = vunpack.c.l.b16 %v1286
    %v1566 = vunpack.c.h.b16 %v1286
    %v1567 = vunpack.c.l.b16 %v1287
    %v1568 = vunpack.c.l.b16 %v1288
    %v1569 = vunpack.c.h.b16 %v1288
    %v1570 = vunpack.c.l.b16 %v1289
    %v1571 = vunpack.c.l.b16 %v1290
    %v1572 = vunpack.c.h.b16 %v1290
    %v1573 = vunpack.c.l.b16 %v1291
    %v1574 = vunpack.c.l.b16 %v1292
    %v1575 = vunpack.c.h.b16 %v1292
    %v1576 = vunpack.c.l.b16 %v1293
    %v1577 = vunpack.c.l.b16 %v1294
    %v1578 = vunpack.c.h.b16 %v1294
    %v1579 = vunpack.c.l.b16 %v1295
    %v1580 = vunpack.c.l.b16 %v1296
    %v1581 = vunpack.c.h.b16 %v1296
    %v1582 = vunpack.c.l.b16 %v1297
    %v1583 = vunpack.c.l.b16 %v1298
    %v1584 = vunpack.c.h.b16 %v1298
    %v1585 = vunpack.c.l.b16 %v1299
    %v1586 = vunpack.c.l.b16 %v1300
    %v1587 = vunpack.c.h.b16 %v1300
    %v1588 = vunpack.c.l.b16 %v1301
    %v1589 = vunpack.c.l.b16 %v1302
    %v1590 = vunpack.c.h.b16 %v1302
    %v1591 = vunpack.c.l.b16 %v1303
    %v1592 = vunpack.c.l.b16 %v1304
    %v1593 = vunpack.c.h.b16 %v1304
    %v1594 = vunpack.c.l.b16 %v1305
    %v1595 = vunpack.c.l.b16 %v1306
    %v1596 = vunpack.c.h.b16 %v1306
    %v1597 = vunpack.c.l.b16 %v1307
    %v1598 = vunpack.c.l.b16 %v1308
    %v1599 = vunpack.c.h.b16 %v1308
    %v1600 = vunpack.c.l.b16 %v1309
    %v1601 = vunpack.c.l.b16 %v1310
    %v1602 = vunpack.c.h.b16 %v1310
    %v1603 = vunpack.c.l.b16 %v1311
    %v1604 = vunpack.c.l.b16 %v1312
    %v1605 = vunpack.c.h.b16 %v1312
    %v1606 = vunpack.c.l.b16 %v1313
    %v1607 = vunpack.c.l.b16 %v1314
    %v1608 = vunpack.c.h.b16 %v1314
    %v1609 = vunpack.c.l.b16 %v1315
    %v1610 = vunpack.c.l.b16 %v1316
    %v1611 = vunpack.c.h.b16 %v1316
    %v1612 = vunpack.c.l.b16 %v1317
    %v1613 = vunpack.c.l.b16 %v1318
    %v1614 = vunpack.c.h.b16 %v1318
    %v1615 = vunpack.c.l.b16 %v1319
    %v1616 = vunpack.c.l.b16 %v1320
    %v1617 = vunpack.c.h.b16 %v1320
    %v1618 = vunpack.c.l.b16 %v1321
    %v1619 = vunpack.c.l.b16 %v1322
    %v1620 = vunpack.c.h.b16 %v1322
    %v1621 = vunpack.c.l.b16 %v1323
    %v1622 = vunpack.c.l.b16 %v1324
    %v1623 = vunpack.c.h.b16 %v1324
    %v1624 = vunpack.c.l.b16 %v1325
    %v1625 = vunpack.c.l.b16 %v1326
    %v1626 = vunpack.c.h.b16 %v1326
    %v1627 = vunpack.c.l.b16 %v1327
    %v1628 = vunpack.c.l.b16 %v1328
    %v1629 = vunpack.c.h.b16 %v1328
    %v1630 = vunpack.c.l.b16 %v1329
    %v1631 = vunpack.c.l.b16 %v1330
    %v1632 = vunpack.c.h.b16 %v1330
    %v1633 = vunpack.c.l.b16 %v1331
    %v1634 = vunpack.c.l.b16 %v1332
    %v1635 = vunpack.c.h.b16 %v1332
    %v1636 = vunpack.c.l.b16 %v1333
    %v1637 = vunpack.c.l.b16 %v1334
    %v1638 = vunpack.c.h.b16 %v1334
    %v1639 = vunpack.c.l.b16 %v1335
    %v1640 = vunpack.c.l.b16 %v1336
    %v1641 = vunpack.c.h.b16 %v1336
    %v1642 = vunpack.c.l.b16 %v1337
    %v1643 = vunpack.c.l.b16 %v1338
    %v1644 = vunpack.c.h.b16 %v1338
    %v1645 = vunpack.c.l.b16 %v1339
    %v1646 = vunpack.c.l.b16 %v1340
    %v1647 = vunpack.c.h.b16 %v1340
    %v1648 = vunpack.c.l.b16 %v1341
    %v1649 = vunpack.c.l.b16 %v1342
    %v1650 = vunpack.c.h.b16 %v1342
    %v1651 = vunpack.c.l.b16 %v1343
    %v1652 = vunpack.c.l.b16 %v1344
    %v1653 = vunpack.c.h.b16 %v1344
    %v1654 = vunpack.c.l.b16 %v1345
    %v1655 = vunpack.c.l.b16 %v1346
    %v1656 = vunpack.c.h.b16 %v1346
    %v1657 = vunpack.c.l.b16 %v1347
    %v1658 = vunpack.c.l.b16 %v1348
    %v1659 = vunpack.c.h.b16 %v1348
    %v1660 = vunpack.c.l.b16 %v1349
    %v1661 = vunpack.c.l.b16 %v1350
    %v1662 = vunpack.c.h.b16 %v1350
    %v1663 = vunpack.c.l.b16 %v1351
    %v1664 = vunpack.c.l.b16 %v1352
    %v1665 = vunpack.c.h.b16 %v1352
    %v1666 = vunpack.c.l.b16 %v1353
    %v1667 = vunpack.c.l.b16 %v1354
    %v1668 = vunpack.c.h.b16 %v1354
    %v1669 = vunpack.c.l.b16 %v1355
    %v1670 = vunpack.c.l.b16 %v1356
    %v1671 = vunpack.c.h.b16 %v1356
    %v1672 = vunpack.c.l.b16 %v1357
    %v1673 = vunpack.c.l.b16 %v1358
    %v1674 = vunpack.c.h.b16 %v1358
    %v1675 = vunpack.c.l.b16 %v1359
    %v1676 = vunpack.c.l.b16 %v1360
    %v1677 = vunpack.c.h.b16 %v1360
    %v1678 = vunpack.c.l.b16 %v1361
    %v1679 = vunpack.c.l.b16 %v1362
    %v1680 = vunpack.c.h.b16 %v1362
    %v1681 = vunpack.c.l.b16 %v1363
    %v1682 = vunpack.c.l.b16 %v1364
    %v1683 = vunpack.c.h.b16 %v1364
    %v1684 = vunpack.c.l.b16 %v1365
    %v1685 = vunpack.c.l.b16 %v1366
    %v1686 = vunpack.c.h.b16 %v1366
    %v1687 = vunpack.c.l.b16 %v1367
    %v1688 = vunpack.c.l.b16 %v1368
    %v1689 = vunpack.c.h.b16 %v1368
    %v1690 = vunpack.c.l.b16 %v1369
    %v1691 = vunpack.c.l.b16 %v1370
    %v1692 = vunpack.c.h.b16 %v1370
    %v1693 = vunpack.c.l.b16 %v1371
    %v1694 = vunpack.c.l.b16 %v1372
    %v1695 = vunpack.c.h.b16 %v1372
    %v1696 = vunpack.c.l.b16 %v1373
    %v1697 = vunpack.c.l.b16 %v1374
    %v1698 = vunpack.c.h.b16 %v1374
    %v1699 = vunpack.c.l.b16 %v1375
    %v1700 = vunpack.c.l.b16 %v1376
    %v1701 = vunpack.c.h.b16 %v1376
    %v1702 = vunpack.c.l.b16 %v1377
    %v1703 = vunpack.c.l.b16 %v1378
    %v1704 = vunpack.c.h.b16 %v1378
    %v1705 = vunpack.c.l.b16 %v1379
    %v1706 = vunpack.c.l.b16 %v1380
    %v1707 = vunpack.c.h.b16 %v1380
    %v1708 = vunpack.c.l.b16 %v1381
    %v1709 = vunpack.c.l.b16 %v1382
    %v1710 = vunpack.c.h.b16 %v1382
    %v1711 = vunpack.c.l.b16 %v1383
    %v1712 = vpack.c.b16 %v1523, %v1520
    %v1713 = vpack.c.b16 %v1524, %v1521
    %v1714 = vpack.c.b16 %v1525, %v1522
    %v1715 = vpack.c.b16 %v1529, %v1526
    %v1716 = vpack.c.b16 %v1530, %v1527
    %v1717 = vpack.c.b16 %v1531, %v1528
    %v1718 = vpack.c.b16 %v1535, %v1532
    %v1719 = vpack.c.b16 %v1536, %v1533
    %v1720 = vpack.c.b16 %v1537, %v1534
    %v1721 = vpack.c.b16 %v1541, %v1538
    %v1722 = vpack.c.b16 %v1542, %v1539
    %v1723 = vpack.c.b16 %v1543, %v1540
    %v1724 = vpack.c.b16 %v1547, %v1544
    %v1725 = vpack.c.b16 %v1548, %v1545
    %v1726 = vpack.c.b16 %v1549, %v1546
    %v1727 = vpack.c.b16 %v1553, %v1550
    %v1728 = vpack.c.b16 %v1554, %v1551
    %v1729 = vpack.c.b16 %v1555, %v1552
    %v1730 = vpack.c.b16 %v1559, %v1556
    %v1731 = vpack.c.b16 %v1560, %v1557
    %v1732 = vpack.c.b16 %v1561, %v1558
    %v1733 = vpack.c.b16 %v1565, %v1562
    %v1734 = vpack.c.b16 %v1566, %v1563
    %v1735 = vpack.c.b16 %v1567, %v1564
    %v1736 = vpack.c.b16 %v1571, %v1568
    %v1737 = vpack.c.b16 %v1572, %v1569
    %v1738 = vpack.c.b16 %v1573, %v1570
    %v1739 = vpack.c.b16 %v1577, %v1574
    %v1740 = vpack.c.b16 %v1578, %v1575
    %v1741 = vpack.c.b16 %v1579, %v1576
    %v1742 = vpack.c.b16 %v1583, %v1580
    %v1743 = vpack.c.b16 %v1584, %v1581
    %v1744 = vpack.c.b16 %v1585, %v1582
    %v1745 = vpack.c.b16 %v1589, %v1586
    %v1746 = vpack.c.b16 %v1590, %v1587
    %v1747 = vpack.c.b16 %v1591, %v1588
    %v1748 = vpack.c.b16 %v1595, %v1592
    %v1749 = vpack.c.b16 %v1596, %v1593
    %v1750 = vpack.c.b16 %v1597, %v1594
    %v1751 = vpack.c.b16 %v1601, %v1598
    %v1752 = vpack.c.b16 %v1602, %v1599
    %v1753 = vpack.c.b16 %v1603, %v1600
    %v1754 = vpack.c.b16 %v1607, %v1604
    %v1755 = vpack.c.b16 %v1608, %v1605
    %v1756 = vpack.c.b16 %v1609, %v1606
    %v1757 = vpack.c.b16 %v1613, %v1610
    %v1758 = vpack.c.b16 %v1614, %v1611
    %v1759 = vpack.c.b16 %v1615, %v1612
    %v1760 = vpack.c.b16 %v1619, %v1616
    %v1761 = vpack.c.b16 %v1620, %v1617
    %v1762 = vpack.c.b16 %v1621, %v1618
    %v1763 = vpack.c.b16 %v1625, %v1622
    %v1764 = vpack.c.b16 %v1626, %v1623
    %v1765 = vpack.c.b16 %v1627, %v1624
    %v1766 = vpack.c.b16 %v1631, %v1628
    %v1767 = vpack.c.b16 %v1632, %v1629
    %v1768 = vpack.c.b16 %v1633, %v1630
    %v1769 = vpack.c.b16 %v1637, %v1634
    %v1770 = vpack.c.b16 %v1638, %v1635
    %v1771 = vpack.c.b16 %v1639, %v1636
    %v1772 = vpack.c.b16 %v1643, %v1640
    %v1773 = vpack.c.b16 %v1644, %v1641
    %v1774 = vpack.c.b16 %v1645, %v1642
    %v1775 = vpack.c.b16 %v1649, %v1646
    %v1776 = vpack.c.b16 %v1650, %v1647
    %v1777 = vpack.c.b16 %v1651, %v1648
    %v1778 = vpack.c.b16 %v1655, %v1652
    %v1779 = vpack.c.b16 %v1656, %v1653
    %v1780 = vpack.c.b16 %v1657, %v1654
    %v1781 = vpack.c.b16 %v1661, %v1658
    %v1782 = vpack.c.b16 %v1662, %v1659
    %v1783 = vpack.c.b16 %v1663, %v1660
    %v1784 = vpack.c.b16 %v1667, %v1664
    %v1785 = vpack.c.b16 %v1668, %v1665
    %v1786 = vpack.c.b16 %v1669, %v1666
    %v1787 = vpack.c.b16 %v1673, %v1670
    %v1788 = vpack.c.b16 %v1674, %v1671
    %v1789 = vpack.c.b16 %v1675, %v1672
    %v1790 = vpack.c.b16 %v1679, %v1676
    %v1791 = vpack.c.b16 %v1680, %v1677
    %v1792 = vpack.c.b16 %v1681, %v1678
    %v1793 = vpack.c.b16 %v1685, %v1682
    %v1794 = vpack.c.b16 %v1686, %v1683
    %v1795 = vpack.c.b16 %v1687, %v1684
    %v1796 = vpack.c.b16 %v1691, %v1688
    %v1797 = vpack.c.b16 %v1692, %v1689
    %v1798 = vpack.c.b16 %v1693, %v1690
    %v1799 = vpack.c.b16 %v1697, %v1694
    %v1800 = vpack.c.b16 %v1698, %v1695
    %v1801 = vpack.c.b16 %v1699, %v1696
    %v1802 = vpack.c.b16 %v1703, %v1700
    %v1803 = vpack.c.b16 %v1704, %v1701
    %v1804 = vpack.c.b16 %v1705, %v1702
    %v1805 = vpack.c.b16 %v1709, %v1706
    %v1806 = vpack.c.b16 %v1710, %v1707
    %v1807 = vpack.c.b16 %v1711, %v1708
    %1904 = vmatpush.bf16.msra.mxu0 %v1733
    %1905 = vmatpush.bf16.msra.mxu0 %v1730
    %1906 = vmatpush.bf16.msra.mxu0 %v1727
    %1907 = vmatpush.bf16.msra.mxu0 %v1724
    %1908 = vmatpush.bf16.msra.mxu0 %v1721
    %1909 = vmatpush.bf16.msra.mxu0 %v1718
    %1910 = vmatpush.bf16.msra.mxu0 %v1715
    %1911 = vmatpush.bf16.msra.mxu0 %v1712
    %1912 = vmatmul.bf16.gmra.mxu0 %v1252
    %v1913 = vpop.f32.mrf.mxu0
    %v1914 = vadd.f32 %v1386, %v1913
    %v1915 = vpop.f32.mrf.mxu0
    %1916 = vdwg.mxu0
    %1917 = vmatpush.bf16.msra.mxu0 %v1757
    %1918 = vmatpush.bf16.msra.mxu0 %v1754
    %1919 = vmatpush.bf16.msra.mxu0 %v1751
    %1920 = vmatpush.bf16.msra.mxu0 %v1748
    %1921 = vmatpush.bf16.msra.mxu0 %v1745
    %1922 = vmatpush.bf16.msra.mxu0 %v1742
    %1923 = vmatpush.bf16.msra.mxu0 %v1739
    %1924 = vmatpush.bf16.msra.mxu0 %v1736
    %1925 = vmatmul.bf16.gmra.mxu0 %v1253
    %v1926 = vpop.f32.mrf.mxu0
    %v1927 = vadd.f32 %v1914, %v1926
    %v1928 = vpop.f32.mrf.mxu0
    %1929 = vdwg.mxu0
    %1930 = vmatpush.bf16.msra.mxu0 %v1781
    %1931 = vmatpush.bf16.msra.mxu0 %v1778
    %1932 = vmatpush.bf16.msra.mxu0 %v1775
    %1933 = vmatpush.bf16.msra.mxu0 %v1772
    %1934 = vmatpush.bf16.msra.mxu0 %v1769
    %1935 = vmatpush.bf16.msra.mxu0 %v1766
    %1936 = vmatpush.bf16.msra.mxu0 %v1763
    %1937 = vmatpush.bf16.msra.mxu0 %v1760
    %1938 = vmatmul.bf16.gmra.mxu0 %v1254
    %v1939 = vpop.f32.mrf.mxu0
    %v1940 = vadd.f32 %v1927, %v1939
    %v1941 = vpop.f32.mrf.mxu0
    %1942 = vdwg.mxu0
    %1943 = vmatpush.bf16.msra.mxu0 %v1805
    %1944 = vmatpush.bf16.msra.mxu0 %v1802
    %1945 = vmatpush.bf16.msra.mxu0 %v1799
    %1946 = vmatpush.bf16.msra.mxu0 %v1796
    %1947 = vmatpush.bf16.msra.mxu0 %v1793
    %1948 = vmatpush.bf16.msra.mxu0 %v1790
    %1949 = vmatpush.bf16.msra.mxu0 %v1787
    %1950 = vmatpush.bf16.msra.mxu0 %v1784
    %1951 = vmatmul.bf16.gmra.mxu0 %v1255
    %v1952 = vpop.f32.mrf.mxu0
    %v1953 = vadd.f32 %v1940, %v1952
    %v1954 = vpop.f32.mrf.mxu0
    %1955 = vdwg.mxu0
    %1956 = vmatpush.bf16.msra.mxu0 %v1734
    %1957 = vmatpush.bf16.msra.mxu0 %v1731
    %1958 = vmatpush.bf16.msra.mxu0 %v1728
    %1959 = vmatpush.bf16.msra.mxu0 %v1725
    %1960 = vmatpush.bf16.msra.mxu0 %v1722
    %1961 = vmatpush.bf16.msra.mxu0 %v1719
    %1962 = vmatpush.bf16.msra.mxu0 %v1716
    %1963 = vmatpush.bf16.msra.mxu0 %v1713
    %1964 = vmatmul.bf16.gmra.mxu0 %v1252
    %v1965 = vpop.f32.mrf.mxu0
    %v1966 = vadd.f32 %v1387, %v1965
    %v1967 = vpop.f32.mrf.mxu0
    %1968 = vdwg.mxu0
    %1969 = vmatpush.bf16.msra.mxu0 %v1758
    %1970 = vmatpush.bf16.msra.mxu0 %v1755
    %1971 = vmatpush.bf16.msra.mxu0 %v1752
    %1972 = vmatpush.bf16.msra.mxu0 %v1749
    %1973 = vmatpush.bf16.msra.mxu0 %v1746
    %1974 = vmatpush.bf16.msra.mxu0 %v1743
    %1975 = vmatpush.bf16.msra.mxu0 %v1740
    %1976 = vmatpush.bf16.msra.mxu0 %v1737
    %1977 = vmatmul.bf16.gmra.mxu0 %v1253
    %v1978 = vpop.f32.mrf.mxu0
    %v1979 = vadd.f32 %v1966, %v1978
    %v1980 = vpop.f32.mrf.mxu0
    %1981 = vdwg.mxu0
    %1982 = vmatpush.bf16.msra.mxu0 %v1782
    %1983 = vmatpush.bf16.msra.mxu0 %v1779
    %1984 = vmatpush.bf16.msra.mxu0 %v1776
    %1985 = vmatpush.bf16.msra.mxu0 %v1773
    %1986 = vmatpush.bf16.msra.mxu0 %v1770
    %1987 = vmatpush.bf16.msra.mxu0 %v1767
    %1988 = vmatpush.bf16.msra.mxu0 %v1764
    %1989 = vmatpush.bf16.msra.mxu0 %v1761
    %1990 = vmatmul.bf16.gmra.mxu0 %v1254
    %v1991 = vpop.f32.mrf.mxu0
    %v1992 = vadd.f32 %v1979, %v1991
    %v1993 = vpop.f32.mrf.mxu0
    %1994 = vdwg.mxu0
    %1995 = vmatpush.bf16.msra.mxu0 %v1806
    %1996 = vmatpush.bf16.msra.mxu0 %v1803
    %1997 = vmatpush.bf16.msra.mxu0 %v1800
    %1998 = vmatpush.bf16.msra.mxu0 %v1797
    %1999 = vmatpush.bf16.msra.mxu0 %v1794
    %2000 = vmatpush.bf16.msra.mxu0 %v1791
    %2001 = vmatpush.bf16.msra.mxu0 %v1788
    %2002 = vmatpush.bf16.msra.mxu0 %v1785
    %2003 = vmatmul.bf16.gmra.mxu0 %v1255
    %v2004 = vpop.f32.mrf.mxu0
    %v2005 = vadd.f32 %v1992, %v2004
    %v2006 = vpop.f32.mrf.mxu0
    %2007 = vdwg.mxu0
    %2008 = vmatpush.bf16.msra.mxu0 %v1735
    %2009 = vmatpush.bf16.msra.mxu0 %v1732
    %2010 = vmatpush.bf16.msra.mxu0 %v1729
    %2011 = vmatpush.bf16.msra.mxu0 %v1726
    %2012 = vmatpush.bf16.msra.mxu0 %v1723
    %2013 = vmatpush.bf16.msra.mxu0 %v1720
    %2014 = vmatpush.bf16.msra.mxu0 %v1717
    %2015 = vmatpush.bf16.msra.mxu0 %v1714
    %2016 = vmatmul.bf16.gmra.mxu0 %v1252
    %v2017 = vpop.f32.mrf.mxu0
    %v2018 = vadd.f32 %v1388, %v2017
    %v2019 = vpop.f32.mrf.mxu0
    %2020 = vdwg.mxu0
    %2021 = vmatpush.bf16.msra.mxu0 %v1759
    %2022 = vmatpush.bf16.msra.mxu0 %v1756
    %2023 = vmatpush.bf16.msra.mxu0 %v1753
    %2024 = vmatpush.bf16.msra.mxu0 %v1750
    %2025 = vmatpush.bf16.msra.mxu0 %v1747
    %2026 = vmatpush.bf16.msra.mxu0 %v1744
    %2027 = vmatpush.bf16.msra.mxu0 %v1741
    %2028 = vmatpush.bf16.msra.mxu0 %v1738
    %2029 = vmatmul.bf16.gmra.mxu0 %v1253
    %v2030 = vpop.f32.mrf.mxu0
    %v2031 = vadd.f32 %v2018, %v2030
    %v2032 = vpop.f32.mrf.mxu0
    %2033 = vdwg.mxu0
    %2034 = vmatpush.bf16.msra.mxu0 %v1783
    %2035 = vmatpush.bf16.msra.mxu0 %v1780
    %2036 = vmatpush.bf16.msra.mxu0 %v1777
    %2037 = vmatpush.bf16.msra.mxu0 %v1774
    %2038 = vmatpush.bf16.msra.mxu0 %v1771
    %2039 = vmatpush.bf16.msra.mxu0 %v1768
    %2040 = vmatpush.bf16.msra.mxu0 %v1765
    %2041 = vmatpush.bf16.msra.mxu0 %v1762
    %2042 = vmatmul.bf16.gmra.mxu0 %v1254
    %v2043 = vpop.f32.mrf.mxu0
    %v2044 = vadd.f32 %v2031, %v2043
    %v2045 = vpop.f32.mrf.mxu0
    %2046 = vdwg.mxu0
    %2047 = vmatpush.bf16.msra.mxu0 %v1807
    %2048 = vmatpush.bf16.msra.mxu0 %v1804
    %2049 = vmatpush.bf16.msra.mxu0 %v1801
    %2050 = vmatpush.bf16.msra.mxu0 %v1798
    %2051 = vmatpush.bf16.msra.mxu0 %v1795
    %2052 = vmatpush.bf16.msra.mxu0 %v1792
    %2053 = vmatpush.bf16.msra.mxu0 %v1789
    %2054 = vmatpush.bf16.msra.mxu0 %v1786
    %2055 = vmatmul.bf16.gmra.mxu0 %v1255
    %v2056 = vpop.f32.mrf.mxu0
    %v2057 = vadd.f32 %v2044, %v2056
    %v2058 = vpop.f32.mrf.mxu0
    %2059 = vdwg.mxu0
    %v2060 = vmax.f32 %v1953, 0.0
    %v2061 = vmax.f32 %v2005, 0.0
    %v2062 = vmax.f32 %v2057, 0.0
    %v2063 = vpack.c.bf16 %v2060, %v2060
    %v2064 = vpack.c.bf16 %v2061, %v2061
    %v2065 = vpack.c.bf16 %v2062, %v2062
    %v2066 = vld [vmem:[#allocation13] sm:$0xf]
    %v2067 = vld [vmem:[#allocation13 + $0x4] sm:$0xf]
    %v2068 = vld [vmem:[#allocation13 + $0x8] sm:$0xf]
    %v2069 = vld [vmem:[#allocation13 + $0xc] sm:$0xf]
    %v2070 = vld [vmem:[#allocation13 + $0x10] sm:$0xf]
    %v2071 = vld [vmem:[#allocation13 + $0x14] sm:$0xf]
    %v2072 = vld [vmem:[#allocation13 + $0x18] sm:$0xf]
    %v2073 = vld [vmem:[#allocation13 + $0x1c] sm:$0xf]
    %v2074 = vld [vmem:[#allocation13 + $0x20] sm:$0xf]
    %v2075 = vld [vmem:[#allocation13 + $0x24] sm:$0xf]
    %v2076 = vld [vmem:[#allocation13 + $0x28] sm:$0xf]
    %v2077 = vld [vmem:[#allocation13 + $0x2c] sm:$0xf]
    %v2078 = vld [vmem:[#allocation13 + $0x30] sm:$0xf]
    %v2079 = vld [vmem:[#allocation13 + $0x34] sm:$0xf]
    %v2080 = vld [vmem:[#allocation13 + $0x38] sm:$0xf]
    %v2081 = vld [vmem:[#allocation13 + $0x3c] sm:$0xf]
    %v2082 = vld [vmem:[#allocation13 + $0x40] sm:$0xf]
    %v2083 = vld [vmem:[#allocation13 + $0x44] sm:$0xf]
    %v2084 = vld [vmem:[#allocation13 + $0x48] sm:$0xf]
    %v2085 = vld [vmem:[#allocation13 + $0x4c] sm:$0xf]
    %v2086 = vld [vmem:[#allocation13 + $0x50] sm:$0xf]
    %v2087 = vld [vmem:[#allocation13 + $0x54] sm:$0xf]
    %v2088 = vld [vmem:[#allocation13 + $0x58] sm:$0xf]
    %v2089 = vld [vmem:[#allocation13 + $0x5c] sm:$0xf]
    %v2090 = vld [vmem:[#allocation13 + $0x60] sm:$0xf]
    %v2091 = vld [vmem:[#allocation13 + $0x64] sm:$0xf]
    %v2092 = vld [vmem:[#allocation13 + $0x68] sm:$0xf]
    %v2093 = vld [vmem:[#allocation13 + $0x6c] sm:$0xf]
    %v2094 = vld [vmem:[#allocation13 + $0x70] sm:$0xf]
    %v2095 = vld [vmem:[#allocation13 + $0x74] sm:$0xf]
    %v2096 = vld [vmem:[#allocation13 + $0x78] sm:$0xf]
    %v2097 = vld [vmem:[#allocation13 + $0x7c] sm:$0xf]
    %v2098 = vld [vmem:[#allocation13 + $0x80] sm:$0xf]
    %v2099 = vld [vmem:[#allocation13 + $0x84] sm:$0xf]
    %v2100 = vld [vmem:[#allocation13 + $0x88] sm:$0xf]
    %v2101 = vld [vmem:[#allocation13 + $0x8c] sm:$0xf]
    %v2102 = vld [vmem:[#allocation13 + $0x90] sm:$0xf]
    %v2103 = vld [vmem:[#allocation13 + $0x94] sm:$0xf]
    %v2104 = vld [vmem:[#allocation13 + $0x98] sm:$0xf]
    %v2105 = vld [vmem:[#allocation13 + $0x9c] sm:$0xf]
    %v2106 = vld [vmem:[#allocation13 + $0xa0] sm:$0xf]
    %v2107 = vld [vmem:[#allocation13 + $0xa4] sm:$0xf]
    %v2108 = vld [vmem:[#allocation13 + $0xa8] sm:$0xf]
    %v2109 = vld [vmem:[#allocation13 + $0xac] sm:$0xf]
    %v2110 = vld [vmem:[#allocation13 + $0xb0] sm:$0xf]
    %v2111 = vld [vmem:[#allocation13 + $0xb4] sm:$0xf]
    %v2112 = vld [vmem:[#allocation13 + $0xb8] sm:$0xf]
    %v2113 = vld [vmem:[#allocation13 + $0xbc] sm:$0xf]
    %v2114 = vld [vmem:[%s8] sm:$0x1]
    %v2116 = vperm.slane %v2114, 0
    %v2166 = vunpack.c.l.b16 %v2066
    %v2167 = vunpack.c.l.b16 %v2067
    %v2168 = vunpack.c.l.b16 %v2068
    %v2169 = vunpack.c.l.b16 %v2069
    %v2170 = vunpack.c.l.b16 %v2070
    %v2171 = vunpack.c.l.b16 %v2071
    %v2172 = vunpack.c.l.b16 %v2072
    %v2173 = vunpack.c.l.b16 %v2073
    %v2174 = vunpack.c.l.b16 %v2074
    %v2175 = vunpack.c.l.b16 %v2075
    %v2176 = vunpack.c.l.b16 %v2076
    %v2177 = vunpack.c.l.b16 %v2077
    %v2178 = vunpack.c.l.b16 %v2078
    %v2179 = vunpack.c.l.b16 %v2079
    %v2180 = vunpack.c.l.b16 %v2080
    %v2181 = vunpack.c.l.b16 %v2081
    %v2182 = vunpack.c.l.b16 %v2082
    %v2183 = vunpack.c.l.b16 %v2083
    %v2184 = vunpack.c.l.b16 %v2084
    %v2185 = vunpack.c.l.b16 %v2085
    %v2186 = vunpack.c.l.b16 %v2086
    %v2187 = vunpack.c.l.b16 %v2087
    %v2188 = vunpack.c.l.b16 %v2088
    %v2189 = vunpack.c.l.b16 %v2089
    %v2190 = vunpack.c.l.b16 %v2090
    %v2191 = vunpack.c.l.b16 %v2091
    %v2192 = vunpack.c.l.b16 %v2092
    %v2193 = vunpack.c.l.b16 %v2093
    %v2194 = vunpack.c.l.b16 %v2094
    %v2195 = vunpack.c.l.b16 %v2095
    %v2196 = vunpack.c.l.b16 %v2096
    %v2197 = vunpack.c.l.b16 %v2097
    %v2198 = vunpack.c.l.b16 %v2098
    %v2199 = vunpack.c.l.b16 %v2099
    %v2200 = vunpack.c.l.b16 %v2100
    %v2201 = vunpack.c.l.b16 %v2101
    %v2202 = vunpack.c.l.b16 %v2102
    %v2203 = vunpack.c.l.b16 %v2103
    %v2204 = vunpack.c.l.b16 %v2104
    %v2205 = vunpack.c.l.b16 %v2105
    %v2206 = vunpack.c.l.b16 %v2106
    %v2207 = vunpack.c.l.b16 %v2107
    %v2208 = vunpack.c.l.b16 %v2108
    %v2209 = vunpack.c.l.b16 %v2109
    %v2210 = vunpack.c.l.b16 %v2110
    %v2211 = vunpack.c.l.b16 %v2111
    %v2212 = vunpack.c.l.b16 %v2112
    %v2213 = vunpack.c.l.b16 %v2113
    %v2214 = vpack.c.b16 %v2167, %v2166
    %v2215 = vpack.c.b16 %v2169, %v2168
    %v2216 = vpack.c.b16 %v2171, %v2170
    %v2217 = vpack.c.b16 %v2173, %v2172
    %v2218 = vpack.c.b16 %v2175, %v2174
    %v2219 = vpack.c.b16 %v2177, %v2176
    %v2220 = vpack.c.b16 %v2179, %v2178
    %v2221 = vpack.c.b16 %v2181, %v2180
    %v2222 = vpack.c.b16 %v2183, %v2182
    %v2223 = vpack.c.b16 %v2185, %v2184
    %v2224 = vpack.c.b16 %v2187, %v2186
    %v2225 = vpack.c.b16 %v2189, %v2188
    %v2226 = vpack.c.b16 %v2191, %v2190
    %v2227 = vpack.c.b16 %v2193, %v2192
    %v2228 = vpack.c.b16 %v2195, %v2194
    %v2229 = vpack.c.b16 %v2197, %v2196
    %v2230 = vpack.c.b16 %v2199, %v2198
    %v2231 = vpack.c.b16 %v2201, %v2200
    %v2232 = vpack.c.b16 %v2203, %v2202
    %v2233 = vpack.c.b16 %v2205, %v2204
    %v2234 = vpack.c.b16 %v2207, %v2206
    %v2235 = vpack.c.b16 %v2209, %v2208
    %v2236 = vpack.c.b16 %v2211, %v2210
    %v2237 = vpack.c.b16 %v2213, %v2212
    %2262 = vmatpush.bf16.msra.mxu0 %v2221
    %2263 = vmatpush.bf16.msra.mxu0 %v2220
    %2264 = vmatpush.bf16.msra.mxu0 %v2219
    %2265 = vmatpush.bf16.msra.mxu0 %v2218
    %2266 = vmatpush.bf16.msra.mxu0 %v2217
    %2267 = vmatpush.bf16.msra.mxu0 %v2216
    %2268 = vmatpush.bf16.msra.mxu0 %v2215
    %2269 = vmatpush.bf16.msra.mxu0 %v2214
    %2270 = vmatmul.bf16.gmra.mxu0 %v2063
    %v2271 = vpop.f32.mrf.mxu0
    %v2272 = vadd.f32 %v2116, %v2271
    %v2273 = vpop.f32.mrf.mxu0
    %2274 = vdwg.mxu0
    %2275 = vmatpush.bf16.msra.mxu0 %v2229
    %2276 = vmatpush.bf16.msra.mxu0 %v2228
    %2277 = vmatpush.bf16.msra.mxu0 %v2227
    %2278 = vmatpush.bf16.msra.mxu0 %v2226
    %2279 = vmatpush.bf16.msra.mxu0 %v2225
    %2280 = vmatpush.bf16.msra.mxu0 %v2224
    %2281 = vmatpush.bf16.msra.mxu0 %v2223
    %2282 = vmatpush.bf16.msra.mxu0 %v2222
    %2283 = vmatmul.bf16.gmra.mxu0 %v2064
    %v2284 = vpop.f32.mrf.mxu0
    %v2285 = vadd.f32 %v2272, %v2284
    %v2286 = vpop.f32.mrf.mxu0
    %2287 = vdwg.mxu0
    %2288 = vmatpush.bf16.msra.mxu0 %v2237
    %2289 = vmatpush.bf16.msra.mxu0 %v2236
    %2290 = vmatpush.bf16.msra.mxu0 %v2235
    %2291 = vmatpush.bf16.msra.mxu0 %v2234
    %2292 = vmatpush.bf16.msra.mxu0 %v2233
    %2293 = vmatpush.bf16.msra.mxu0 %v2232
    %2294 = vmatpush.bf16.msra.mxu0 %v2231
    %2295 = vmatpush.bf16.msra.mxu0 %v2230
    %2296 = vmatmul.bf16.gmra.mxu0 %v2065
    %v2297 = vpop.f32.mrf.mxu0
    %v2298 = vadd.f32 %v2285, %v2297
    %v2299 = vpop.f32.mrf.mxu0
    %2300 = vdwg.mxu0
    %v2301 = vtanh.pop %v2298
    %2302 = vst [vmem:[#allocation14] sm:$0xff] %v2301
    // Predicated region
    $region66: #{tpu_custom_call.1} parent=1 // pred_check
      _
    $region67: #{tpu_custom_call.1} parent=1 // pred_check_branch
      %2304 = sbr.rel (0) target = $region69
    $region68: #{tpu_custom_call.1} parent=1 // pred_region
      %2306 = vsyncadd [#allocation4], 0
      %s2308 = sshll.u32 [#allocation14], 4
      %s2309 = int_to_ptr.vmem [resolvable:$true] %s2308
      %s2310 = sshll.u32 %s9, 4
      %s2311 = int_to_ptr.hbm [resolvable:$true] %s2310
      %2313 = dma.vmem_to_hbm [thread:$0]  %s2309, 128, %s2311, [#allocation4]
    $region69: #{tpu_custom_call.1} parent=1 // pred_fallthru
      _
    // Predicated region
    $region70: #{tpu_custom_call.1} parent=1 // pred_check
      _
    $region71: #{tpu_custom_call.1} parent=1 // pred_check_branch
      %2315 = sbr.rel (0) target = $region73
    $region72: #{tpu_custom_call.1} parent=1 // pred_region
      %2317 = dma.done [#allocation4], 128
    $region73: #{tpu_custom_call.1} parent=1 // pred_fallthru
      _
    %2318 = vsyncpa [#allocation3], 1
    %2319 = vsyncpa [#allocation6], 1
    %2320 = vsyncpa [#allocation9], 1
    %2321 = vsyncpa [#allocation12], 1
    %2322 = vsyncpa [#allocation4], 1

</llo_original>
